<compile_context>
chip_gen: v5e
topology: v5e:2x2
jax: 0.10.0
libtpu: 0.0.40
codegen_flags: <defaults>
</compile_context>

<pallas_src>
import math

import jax
import jax.numpy as jnp
from jax import lax
from jax.experimental import pallas as pl
from jax.experimental.pallas import tpu as pltpu

# ----------------------------- configuration --------------------------------
B = 2            # batch
T = 8            # decoder sequence length
S = 8            # encoder sequence length
D = 32           # d_model
H = 4            # n_heads
DH = D // H      # head dim
F = 64           # d_ff
EPS = 1e-5       # LayerNorm eps (PyTorch default)
NEG = -1e9       # additive mask value

BT = B * T       # flattened decoder rows
BS = B * S       # flattened encoder rows
assert BT == BS  # activation-slab packing below assumes equal row counts

SCALE = 1.0 / math.sqrt(DH)

# --------- packed-slab lane offsets (shared by wrapper and kernel) -----------
# activation slab (rows = BT): [ x | enc | self_mask | cross_mask ]
A_X, A_ENC, A_SM, A_CM = 0, D, 2 * D, 2 * D + BT
A_LANES = 2 * D + BT + BS                                    # 96

# weight slab (rows = D): [ self_QKV | self_O | cross_Q | cross_KV | cross_O | w1 ]
W_SQKV = 0
W_SO = W_SQKV + 3 * D
W_CQ = W_SO + D
W_CKV = W_CQ + D
W_CO = W_CKV + 2 * D
W_W1 = W_CO + D
W_LANES = W_W1 + F                                           # 320

# bias / LayerNorm slab (1 row):
# [ sQKV_b | sO_b | cQ_b | cKV_b | cO_b | b1 | b2 | g0 b0 g1 b1 g2 b2 ]
B_SQKV = 0
B_SO = B_SQKV + 3 * D
B_CQ = B_SO + D
B_CKV = B_CQ + D
B_CO = B_CKV + 2 * D
B_B1 = B_CO + D
B_B2 = B_B1 + F
B_LN = B_B2 + D        # gamma_i at B_LN + i*2*D, beta_i at B_LN + i*2*D + D
B_LANES = B_LN + 6 * D                                       # 544


# ------------------------------- kernel -------------------------------------
def decoder_layer_kernel(act_ref, wmat_ref, w2_ref, bias_ref, out_ref):
    x = act_ref[:, A_X:A_X + D]          # (BT, D)
    enc = act_ref[:, A_ENC:A_ENC + D]    # (BS, D)
    smask = act_ref[:, A_SM:A_SM + BT]   # (BT, BT)
    cmask = act_ref[:, A_CM:A_CM + BS]   # (BT, BS)

    def wcol(off, width):                # weight-slab lane slice, (D, width)
        return wmat_ref[:, off:off + width]

    def bcol(off, width):                # bias-slab lane slice, (1, width)
        return bias_ref[:, off:off + width]

    def layer_norm(v, idx):
        g = bcol(B_LN + idx * 2 * D, D)
        bb = bcol(B_LN + idx * 2 * D + D, D)
        mu = jnp.mean(v, axis=-1, keepdims=True)
        msq = jnp.mean(v * v, axis=-1, keepdims=True)        # independent reduction
        var = msq - mu * mu                                   # one-pass stats
        return (v - mu) * lax.rsqrt(var + EPS) * g + bb

    def split_heads(z):                  # (L, D) -> (H, L, DH), static lane slices
        return jnp.stack([z[:, h * DH:(h + 1) * DH] for h in range(H)], axis=0)

    def attention(q2, k2, v2, add_mask, wo_off, bo_off):
        # q2: (Lq, D), k2/v2: (Lk, D) with head-grouped columns.
        qh, kh, vh = split_heads(q2), split_heads(k2), split_heads(v2)
        s = jnp.einsum("hqd,hkd->hqk", qh, kh,
                       preferred_element_type=jnp.float32) * SCALE
        s = s + add_mask[None, :, :]
        s = s - jnp.max(s, axis=-1, keepdims=True)
        p = jnp.exp(s)
        p = p * pl.reciprocal(jnp.sum(p, axis=-1, keepdims=True), approx=True)
        o = jnp.einsum("hqk,hkd->hqd", p, vh,
                       preferred_element_type=jnp.float32)    # (H, Lq, DH)
        # fuse per-head output projection + head-sum: concat heads -> one K=D dot
        o_cat = jnp.concatenate([o[h] for h in range(H)], axis=-1)   # (Lq, D)
        return (jnp.dot(o_cat, wcol(wo_off, D), preferred_element_type=jnp.float32)
                + bcol(bo_off, D))

    # ---- masked self-attention + Add&LayerNorm (layer_norm1) ----
    sqkv = (jnp.dot(x, wcol(W_SQKV, 3 * D), preferred_element_type=jnp.float32)
            + bcol(B_SQKV, 3 * D))                            # (BT, 3D)
    self_out = attention(sqkv[:, 0:D], sqkv[:, D:2 * D], sqkv[:, 2 * D:3 * D],
                         smask, W_SO, B_SO)
    x1 = layer_norm(x + self_out, 0)

    # ---- cross-attention with encoder padding mask + Add&LayerNorm (layer_norm2) ----
    qc = (jnp.dot(x1, wcol(W_CQ, D), preferred_element_type=jnp.float32)
          + bcol(B_CQ, D))                                    # (BT, D)
    ckv = (jnp.dot(enc, wcol(W_CKV, 2 * D), preferred_element_type=jnp.float32)
           + bcol(B_CKV, 2 * D))                              # (BS, 2D)
    cross_out = attention(qc, ckv[:, 0:D], ckv[:, D:2 * D], cmask, W_CO, B_CO)
    x2 = layer_norm(x1 + cross_out, 1)

    # ---- pointwise feed-forward + Add&LayerNorm (layer_norm3) ----
    hdn = jnp.maximum(
        jnp.dot(x2, wcol(W_W1, F), preferred_element_type=jnp.float32)
        + bcol(B_B1, F), 0.0)
    ff = (jnp.dot(hdn, w2_ref[...], preferred_element_type=jnp.float32)
          + bcol(B_B2, D))
    out_ref[...] = layer_norm(x2 + ff, 2)


# ------------------------------- wrapper -------------------------------------
@jax.jit
def decoder_layer(x, enc_out, enc_mask, params):
    (sqkv_w, sqkv_b, so_w, so_b,
     cqkv_w, cqkv_b, co_w, co_b,
     ln_g, ln_b, w1, b1, w2, b2) = params

    # fused projection weights / biases (head columns stay contiguous groups)
    s_qkv_w = jnp.concatenate([sqkv_w[0], sqkv_w[1], sqkv_w[2]], axis=1)   # (D, 3D)
    s_qkv_b = jnp.concatenate([sqkv_b[0], sqkv_b[1], sqkv_b[2]], axis=1)   # (1, 3D)
    c_kv_w = jnp.concatenate([cqkv_w[1], cqkv_w[2]], axis=1)               # (D, 2D)
    c_kv_b = jnp.concatenate([cqkv_b[1], cqkv_b[2]], axis=1)               # (1, 2D)

    # packed matmul-weight slab (rows = D)
    wmat = jnp.concatenate([s_qkv_w, so_w, cqkv_w[0], c_kv_w, co_w, w1], axis=1)
    assert wmat.shape == (D, W_LANES)

    # packed bias / LayerNorm slab (1 row)
    bias = jnp.concatenate(
        [s_qkv_b, so_b, cqkv_b[0], c_kv_b, co_b, b1, b2,
         ln_g[0], ln_b[0], ln_g[1], ln_b[1], ln_g[2], ln_b[2]], axis=1)
    assert bias.shape == (1, B_LANES)

    # flattened activations: batch folded into the sublane axis
    x_f = x.reshape(BT, D)
    enc_f = enc_out.reshape(BS, D)

    # additive masks (block-diagonal over batch; causal for self-attn,
    # encoder padding mask for cross-attn)
    r = jnp.arange(BT)
    same_b = (r[:, None] // T) == (r[None, :] // T)
    causal = r[None, :] <= r[:, None]
    self_mask = jnp.where(same_b & causal, 0.0, NEG).astype(jnp.float32)   # (BT, BT)

    ce = jnp.arange(BS)
    same_b_c = (r[:, None] // T) == (ce[None, :] // S)
    keep = enc_mask.reshape(BS)[None, :] > 0.0
    cross_mask = jnp.where(same_b_c & keep, 0.0, NEG).astype(jnp.float32)  # (BT, BS)

    act = jnp.concatenate([x_f, enc_f, self_mask, cross_mask], axis=1)
    assert act.shape == (BT, A_LANES)

    inputs = (act, wmat, w2, bias)

    def full(shape):
        return pl.BlockSpec(shape, lambda i, n=len(shape): (0,) * n)

    out_flat = pl.pallas_call(
        decoder_layer_kernel,
        out_shape=jax.ShapeDtypeStruct((BT, D), jnp.float32),
        grid_spec=pltpu.PrefetchScalarGridSpec(
            num_scalar_prefetch=0,
            grid=(1,),                       # whole problem in one VMEM-resident step
            in_specs=[full(a.shape) for a in inputs],
            out_specs=pl.BlockSpec((BT, D), lambda i: (0, 0)),
        ),
        compiler_params=pltpu.CompilerParams(dimension_semantics=("arbitrary",)),
    )(*inputs)

    return out_flat.reshape(B, T, D)


# --------------------------- pure-JAX reference -------------------------------
def reference_decoder_layer(x, enc_out, enc_mask, params):
    (sqkv_w, sqkv_b, so_w, so_b,
     cqkv_w, cqkv_b, co_w, co_b,
     ln_g, ln_b, w1, b1, w2, b2) = params
    scale = 1.0 / math.sqrt(DH)

    def layer_norm(v, idx):
        mu = jnp.mean(v, axis=-1, keepdims=True)
        var = jnp.mean((v - mu) ** 2, axis=-1, keepdims=True)
        return (v - mu) / jnp.sqrt(var + EPS) * ln_g[idx] + ln_b[idx]

    def mha(q_in, kv_in, qkv_w, qkv_b, o_w, o_b, extra_mask):
        q = q_in @ qkv_w[0] + qkv_b[0]
        k = kv_in @ qkv_w[1] + qkv_b[1]
        v = kv_in @ qkv_w[2] + qkv_b[2]
        qh = q.reshape(q.shape[0], H, DH).transpose(1, 0, 2)
        kh = k.reshape(k.shape[0], H, DH).transpose(1, 0, 2)
        vh = v.reshape(v.shape[0], H, DH).transpose(1, 0, 2)
        s = jnp.einsum("hqd,hkd->hqk", qh, kh) * scale + extra_mask[None]
        p = jax.nn.softmax(s, axis=-1)
        o = jnp.einsum("hqk,hkd->hqd", p, vh).transpose(1, 0, 2).reshape(q.shape[0], D)
        return o @ o_w + o_b

    def single(xb, eb, mb):
        row = jnp.arange(T)[:, None]
        col = jnp.arange(T)[None, :]
        causal = jnp.where(col <= row, 0.0, NEG)
        self_out = mha(xb, xb, sqkv_w, sqkv_b, so_w, so_b, causal)
        x1 = layer_norm(xb + self_out, 0)
        enc_add = jnp.where(mb > 0.0, 0.0, NEG)  # (1, S)
        cross = mha(x1, eb, cqkv_w, cqkv_b, co_w, co_b, enc_add)
        x2 = layer_norm(x1 + cross, 1)
        ff = jnp.maximum(x2 @ w1 + b1, 0.0) @ w2 + b2
        return layer_norm(x2 + ff, 2)

    return jax.vmap(single)(x, enc_out, enc_mask)


# ------------------------------- main ----------------------------------------
if __name__ == "__main__":
    key = jax.random.PRNGKey(0)
    keys = jax.random.split(key, 20)

    def init(k, shape, scale=0.05):
        return (scale * jax.random.normal(k, shape)).astype(jnp.float32)

    params = (
        init(keys[0], (3, D, D)),                       # self qkv weights
        init(keys[1], (3, 1, D)),                       # self qkv biases
        init(keys[2], (D, D)),                          # self output weight
        init(keys[3], (1, D)),                          # self output bias
        init(keys[4], (3, D, D)),                       # cross qkv weights
        init(keys[5], (3, 1, D)),                       # cross qkv biases
        init(keys[6], (D, D)),                          # cross output weight
        init(keys[7], (1, D)),                          # cross output bias
        jnp.ones((3, 1, D), jnp.float32),               # layernorm gamma
        jnp.zeros((3, 1, D), jnp.float32),              # layernorm beta
        init(keys[8], (D, F)),                          # ffn w1
        init(keys[9], (1, F)),                          # ffn b1
        init(keys[10], (F, D)),                         # ffn w2
        init(keys[11], (1, D)),                         # ffn b2
    )

    x = init(keys[12], (B, T, D), scale=1.0)            # decoder input
    enc_out = init(keys[13], (B, S, D), scale=1.0)      # encoder output
    # encoder padding mask: last 2 encoder positions of batch 1 are padding
    enc_mask = jnp.ones((B, 1, S), jnp.float32)
    enc_mask = enc_mask.at[1, 0, S - 2:].set(0.0)

    out = decoder_layer(x, enc_out, enc_mask, params)
    out = jax.block_until_ready(out)

    ref = reference_decoder_layer(x, enc_out, enc_mask, params)
    assert out.shape == (B, T, D)
    # tolerance accounts for the approximate (EUP) reciprocal in the softmax
    assert jnp.allclose(out, ref, atol=2e-3, rtol=2e-3), (
        f"max abs err {jnp.max(jnp.abs(out - ref))}")

    print("KERNEL_OK")
</pallas_src>

<mosaic_0001>
module attributes {stable_mosaic.version = 11 : i64} {
  func.func @decoder_layer_kernel(%arg0: i32, %arg1: memref<16x96xf32, #tpu.memory_space<vmem>>, %arg2: memref<32x320xf32, #tpu.memory_space<vmem>>, %arg3: memref<64x32xf32, #tpu.memory_space<vmem>>, %arg4: memref<1x544xf32, #tpu.memory_space<vmem>>, %arg5: memref<16x32xf32, #tpu.memory_space<vmem>>) attributes {dimension_semantics = [#tpu.dimension_semantics<arbitrary>], iteration_bounds = array<i64: 1>, scalar_prefetch = 0 : i64, scratch_operands = 0 : i64, tpu.core_type = #tpu.core_type<tc>, window_params = [{pipeline_mode = #tpu.pipeline_mode<synchronous>, transform_indices = @transform_0, window_bounds = array<i64: 16, 96>}, {pipeline_mode = #tpu.pipeline_mode<synchronous>, transform_indices = @transform_1, window_bounds = array<i64: 32, 320>}, {pipeline_mode = #tpu.pipeline_mode<synchronous>, transform_indices = @transform_2, window_bounds = array<i64: 64, 32>}, {pipeline_mode = #tpu.pipeline_mode<synchronous>, transform_indices = @transform_3, window_bounds = array<i64: 1, 544>}, {pipeline_mode = #tpu.pipeline_mode<synchronous>, transform_indices = @transform_4, window_bounds = array<i64: 16, 32>}]} {
    %c0 = arith.constant 0 : index
    %c0_0 = arith.constant 0 : index
    %0 = vector.load %arg1[%c0, %c0_0] : memref<16x96xf32, #tpu.memory_space<vmem>>, vector<16x32xf32>
    %c0_1 = arith.constant 0 : index
    %c32 = arith.constant 32 : index
    %1 = vector.load %arg1[%c0_1, %c32] : memref<16x96xf32, #tpu.memory_space<vmem>>, vector<16x32xf32>
    %c0_2 = arith.constant 0 : index
    %c64 = arith.constant 64 : index
    %2 = vector.load %arg1[%c0_2, %c64] : memref<16x96xf32, #tpu.memory_space<vmem>>, vector<16x16xf32>
    %c0_3 = arith.constant 0 : index
    %c80 = arith.constant 80 : index
    %3 = vector.load %arg1[%c0_3, %c80] : memref<16x96xf32, #tpu.memory_space<vmem>>, vector<16x16xf32>
    %c0_4 = arith.constant 0 : index
    %c0_5 = arith.constant 0 : index
    %4 = vector.load %arg2[%c0_4, %c0_5] : memref<32x320xf32, #tpu.memory_space<vmem>>, vector<32x96xf32>
    %cst = arith.constant dense<0.000000e+00> : vector<16x96xf32>
    %5 = tpu.matmul %0, %4, %cst {dimension_numbers = #tpu.dot_dimension_numbers<[1], [0], [0], [1], [0, 0, 1, 1], [], []>} : vector<16x32xf32>, vector<32x96xf32>, vector<16x96xf32> -> vector<16x96xf32>
    %c0_6 = arith.constant 0 : index
    %c0_7 = arith.constant 0 : index
    %6 = vector.load %arg4[%c0_6, %c0_7] : memref<1x544xf32, #tpu.memory_space<vmem>>, vector<1x96xf32>
    %7 = vector.broadcast %6 : vector<1x96xf32> to vector<16x96xf32>
    %8 = arith.addf %5, %7 : vector<16x96xf32>
    %9 = vector.extract_strided_slice %8 {offsets = [0, 0], sizes = [16, 32], strides = [1, 1]} : vector<16x96xf32> to vector<16x32xf32>
    %10 = vector.extract_strided_slice %8 {offsets = [0, 32], sizes = [16, 32], strides = [1, 1]} : vector<16x96xf32> to vector<16x32xf32>
    %11 = vector.extract_strided_slice %8 {offsets = [0, 64], sizes = [16, 32], strides = [1, 1]} : vector<16x96xf32> to vector<16x32xf32>
    %12 = vector.extract_strided_slice %9 {offsets = [0, 0], sizes = [16, 8], strides = [1, 1]} : vector<16x32xf32> to vector<16x8xf32>
    %13 = vector.extract_strided_slice %9 {offsets = [0, 8], sizes = [16, 8], strides = [1, 1]} : vector<16x32xf32> to vector<16x8xf32>
    %14 = vector.extract_strided_slice %9 {offsets = [0, 16], sizes = [16, 8], strides = [1, 1]} : vector<16x32xf32> to vector<16x8xf32>
    %15 = vector.extract_strided_slice %9 {offsets = [0, 24], sizes = [16, 8], strides = [1, 1]} : vector<16x32xf32> to vector<16x8xf32>
    %16 = vector.shape_cast %12 : vector<16x8xf32> to vector<1x16x8xf32>
    %17 = vector.shape_cast %13 : vector<16x8xf32> to vector<1x16x8xf32>
    %18 = vector.shape_cast %14 : vector<16x8xf32> to vector<1x16x8xf32>
    %19 = vector.shape_cast %15 : vector<16x8xf32> to vector<1x16x8xf32>
    %20 = tpu.concatenate %16, %17, %18, %19 in 0 : vector<1x16x8xf32>, vector<1x16x8xf32>, vector<1x16x8xf32>, vector<1x16x8xf32> -> vector<4x16x8xf32>
    %21 = vector.extract_strided_slice %10 {offsets = [0, 0], sizes = [16, 8], strides = [1, 1]} : vector<16x32xf32> to vector<16x8xf32>
    %22 = vector.extract_strided_slice %10 {offsets = [0, 8], sizes = [16, 8], strides = [1, 1]} : vector<16x32xf32> to vector<16x8xf32>
    %23 = vector.extract_strided_slice %10 {offsets = [0, 16], sizes = [16, 8], strides = [1, 1]} : vector<16x32xf32> to vector<16x8xf32>
    %24 = vector.extract_strided_slice %10 {offsets = [0, 24], sizes = [16, 8], strides = [1, 1]} : vector<16x32xf32> to vector<16x8xf32>
    %25 = vector.shape_cast %21 : vector<16x8xf32> to vector<1x16x8xf32>
    %26 = vector.shape_cast %22 : vector<16x8xf32> to vector<1x16x8xf32>
    %27 = vector.shape_cast %23 : vector<16x8xf32> to vector<1x16x8xf32>
    %28 = vector.shape_cast %24 : vector<16x8xf32> to vector<1x16x8xf32>
    %29 = tpu.concatenate %25, %26, %27, %28 in 0 : vector<1x16x8xf32>, vector<1x16x8xf32>, vector<1x16x8xf32>, vector<1x16x8xf32> -> vector<4x16x8xf32>
    %30 = vector.extract_strided_slice %11 {offsets = [0, 0], sizes = [16, 8], strides = [1, 1]} : vector<16x32xf32> to vector<16x8xf32>
    %31 = vector.extract_strided_slice %11 {offsets = [0, 8], sizes = [16, 8], strides = [1, 1]} : vector<16x32xf32> to vector<16x8xf32>
    %32 = vector.extract_strided_slice %11 {offsets = [0, 16], sizes = [16, 8], strides = [1, 1]} : vector<16x32xf32> to vector<16x8xf32>
    %33 = vector.extract_strided_slice %11 {offsets = [0, 24], sizes = [16, 8], strides = [1, 1]} : vector<16x32xf32> to vector<16x8xf32>
    %34 = vector.shape_cast %30 : vector<16x8xf32> to vector<1x16x8xf32>
    %35 = vector.shape_cast %31 : vector<16x8xf32> to vector<1x16x8xf32>
    %36 = vector.shape_cast %32 : vector<16x8xf32> to vector<1x16x8xf32>
    %37 = vector.shape_cast %33 : vector<16x8xf32> to vector<1x16x8xf32>
    %38 = tpu.concatenate %34, %35, %36, %37 in 0 : vector<1x16x8xf32>, vector<1x16x8xf32>, vector<1x16x8xf32>, vector<1x16x8xf32> -> vector<4x16x8xf32>
    "tpu.trace_start"() <{level = 10 : i32, message = "hqd,hkd->hqk"}> : () -> ()
    %cst_8 = arith.constant dense<0.000000e+00> : vector<4x16x16xf32>
    %39 = tpu.matmul %20, %29, %cst_8 {dimension_numbers = #tpu.dot_dimension_numbers<[2], [2], [1], [1], [0, 0, 0, 1, 1, 1], [0], [0]>} : vector<4x16x8xf32>, vector<4x16x8xf32>, vector<4x16x16xf32> -> vector<4x16x16xf32>
    "tpu.trace_stop"() : () -> ()
    %cst_9 = arith.constant 0.353553385 : f32
    %40 = vector.broadcast %cst_9 : f32 to vector<4x16x16xf32>
    %41 = arith.mulf %39, %40 : vector<4x16x16xf32>
    %42 = vector.shape_cast %2 : vector<16x16xf32> to vector<1x16x16xf32>
    %43 = vector.broadcast %42 : vector<1x16x16xf32> to vector<4x16x16xf32>
    %44 = arith.addf %41, %43 : vector<4x16x16xf32>
    %cst_10 = arith.constant dense<0xFF800000> : vector<4x16xf32>
    %45 = vector.multi_reduction <maximumf>, %44, %cst_10 [2] : vector<4x16x16xf32> to vector<4x16xf32>
    %46 = vector.shape_cast %45 : vector<4x16xf32> to vector<4x16x1xf32>
    %47 = vector.broadcast %46 : vector<4x16x1xf32> to vector<4x16x16xf32>
    %48 = arith.subf %44, %47 : vector<4x16x16xf32>
    %49 = math.exp %48 : vector<4x16x16xf32>
    %cst_11 = arith.constant dense<0.000000e+00> : vector<4x16xf32>
    %50 = vector.multi_reduction <add>, %49, %cst_11 [2] : vector<4x16x16xf32> to vector<4x16xf32>
    %51 = vector.shape_cast %50 : vector<4x16xf32> to vector<4x16x1xf32>
    %52 = tpu.reciprocal %51 {approx = true} : vector<4x16x1xf32> -> vector<4x16x1xf32>
    %53 = vector.broadcast %52 : vector<4x16x1xf32> to vector<4x16x16xf32>
    %54 = arith.mulf %49, %53 : vector<4x16x16xf32>
    "tpu.trace_start"() <{level = 10 : i32, message = "hqk,hkd->hqd"}> : () -> ()
    %cst_12 = arith.constant dense<0.000000e+00> : vector<4x16x8xf32>
    %55 = tpu.matmul %54, %38, %cst_12 {dimension_numbers = #tpu.dot_dimension_numbers<[2], [1], [1], [2], [0, 0, 0, 1, 1, 2], [0], [0]>} : vector<4x16x16xf32>, vector<4x16x8xf32>, vector<4x16x8xf32> -> vector<4x16x8xf32>
    "tpu.trace_stop"() : () -> ()
    %56 = vector.extract_strided_slice %55 {offsets = [0, 0, 0], sizes = [1, 16, 8], strides = [1, 1, 1]} : vector<4x16x8xf32> to vector<1x16x8xf32>
    %57 = vector.shape_cast %56 : vector<1x16x8xf32> to vector<16x8xf32>
    %58 = vector.extract_strided_slice %55 {offsets = [1, 0, 0], sizes = [1, 16, 8], strides = [1, 1, 1]} : vector<4x16x8xf32> to vector<1x16x8xf32>
    %59 = vector.shape_cast %58 : vector<1x16x8xf32> to vector<16x8xf32>
    %60 = vector.extract_strided_slice %55 {offsets = [2, 0, 0], sizes = [1, 16, 8], strides = [1, 1, 1]} : vector<4x16x8xf32> to vector<1x16x8xf32>
    %61 = vector.shape_cast %60 : vector<1x16x8xf32> to vector<16x8xf32>
    %62 = vector.extract_strided_slice %55 {offsets = [3, 0, 0], sizes = [1, 16, 8], strides = [1, 1, 1]} : vector<4x16x8xf32> to vector<1x16x8xf32>
    %63 = vector.shape_cast %62 : vector<1x16x8xf32> to vector<16x8xf32>
    %64 = tpu.concatenate %57, %59, %61, %63 in 1 : vector<16x8xf32>, vector<16x8xf32>, vector<16x8xf32>, vector<16x8xf32> -> vector<16x32xf32>
    %c0_13 = arith.constant 0 : index
    %c96 = arith.constant 96 : index
    %65 = vector.load %arg2[%c0_13, %c96] : memref<32x320xf32, #tpu.memory_space<vmem>>, vector<32x32xf32>
    %cst_14 = arith.constant dense<0.000000e+00> : vector<16x32xf32>
    %66 = tpu.matmul %64, %65, %cst_14 {dimension_numbers = #tpu.dot_dimension_numbers<[1], [0], [0], [1], [0, 0, 1, 1], [], []>} : vector<16x32xf32>, vector<32x32xf32>, vector<16x32xf32> -> vector<16x32xf32>
    %c0_15 = arith.constant 0 : index
    %c96_16 = arith.constant 96 : index
    %67 = vector.load %arg4[%c0_15, %c96_16] : memref<1x544xf32, #tpu.memory_space<vmem>>, vector<1x32xf32>
    %68 = vector.broadcast %67 : vector<1x32xf32> to vector<16x32xf32>
    %69 = arith.addf %66, %68 : vector<16x32xf32>
    %70 = arith.addf %0, %69 : vector<16x32xf32>
    %c0_17 = arith.constant 0 : index
    %c352 = arith.constant 352 : index
    %71 = vector.load %arg4[%c0_17, %c352] : memref<1x544xf32, #tpu.memory_space<vmem>>, vector<1x32xf32>
    %c0_18 = arith.constant 0 : index
    %c384 = arith.constant 384 : index
    %72 = vector.load %arg4[%c0_18, %c384] : memref<1x544xf32, #tpu.memory_space<vmem>>, vector<1x32xf32>
    %cst_19 = arith.constant dense<0.000000e+00> : vector<16xf32>
    %73 = vector.multi_reduction <add>, %70, %cst_19 [1] : vector<16x32xf32> to vector<16xf32>
    %74 = vector.shape_cast %73 : vector<16xf32> to vector<16x1xf32>
    %cst_20 = arith.constant 3.200000e+01 : f32
    %75 = vector.broadcast %cst_20 : f32 to vector<16x1xf32>
    %76 = arith.divf %74, %75 : vector<16x1xf32>
    %77 = arith.mulf %70, %70 : vector<16x32xf32>
    %cst_21 = arith.constant dense<0.000000e+00> : vector<16xf32>
    %78 = vector.multi_reduction <add>, %77, %cst_21 [1] : vector<16x32xf32> to vector<16xf32>
    %79 = vector.shape_cast %78 : vector<16xf32> to vector<16x1xf32>
    %cst_22 = arith.constant 3.200000e+01 : f32
    %80 = vector.broadcast %cst_22 : f32 to vector<16x1xf32>
    %81 = arith.divf %79, %80 : vector<16x1xf32>
    %82 = arith.mulf %76, %76 : vector<16x1xf32>
    %83 = arith.subf %81, %82 : vector<16x1xf32>
    %84 = vector.broadcast %76 : vector<16x1xf32> to vector<16x32xf32>
    %85 = arith.subf %70, %84 : vector<16x32xf32>
    %cst_23 = arith.constant 9.99999974E-6 : f32
    %86 = vector.broadcast %cst_23 : f32 to vector<16x1xf32>
    %87 = arith.addf %83, %86 : vector<16x1xf32>
    %88 = math.rsqrt %87 : vector<16x1xf32>
    %89 = vector.broadcast %88 : vector<16x1xf32> to vector<16x32xf32>
    %90 = arith.mulf %85, %89 : vector<16x32xf32>
    %91 = vector.broadcast %71 : vector<1x32xf32> to vector<16x32xf32>
    %92 = arith.mulf %90, %91 : vector<16x32xf32>
    %93 = vector.broadcast %72 : vector<1x32xf32> to vector<16x32xf32>
    %94 = arith.addf %92, %93 : vector<16x32xf32>
    %c0_24 = arith.constant 0 : index
    %c128 = arith.constant 128 : index
    %95 = vector.load %arg2[%c0_24, %c128] : memref<32x320xf32, #tpu.memory_space<vmem>>, vector<32x32xf32>
    %cst_25 = arith.constant dense<0.000000e+00> : vector<16x32xf32>
    %96 = tpu.matmul %94, %95, %cst_25 {dimension_numbers = #tpu.dot_dimension_numbers<[1], [0], [0], [1], [0, 0, 1, 1], [], []>} : vector<16x32xf32>, vector<32x32xf32>, vector<16x32xf32> -> vector<16x32xf32>
    %c0_26 = arith.constant 0 : index
    %c128_27 = arith.constant 128 : index
    %97 = vector.load %arg4[%c0_26, %c128_27] : memref<1x544xf32, #tpu.memory_space<vmem>>, vector<1x32xf32>
    %98 = vector.broadcast %97 : vector<1x32xf32> to vector<16x32xf32>
    %99 = arith.addf %96, %98 : vector<16x32xf32>
    %c0_28 = arith.constant 0 : index
    %c160 = arith.constant 160 : index
    %100 = vector.load %arg2[%c0_28, %c160] : memref<32x320xf32, #tpu.memory_space<vmem>>, vector<32x64xf32>
    %cst_29 = arith.constant dense<0.000000e+00> : vector<16x64xf32>
    %101 = tpu.matmul %1, %100, %cst_29 {dimension_numbers = #tpu.dot_dimension_numbers<[1], [0], [0], [1], [0, 0, 1, 1], [], []>} : vector<16x32xf32>, vector<32x64xf32>, vector<16x64xf32> -> vector<16x64xf32>
    %c0_30 = arith.constant 0 : index
    %c160_31 = arith.constant 160 : index
    %102 = vector.load %arg4[%c0_30, %c160_31] : memref<1x544xf32, #tpu.memory_space<vmem>>, vector<1x64xf32>
    %103 = vector.broadcast %102 : vector<1x64xf32> to vector<16x64xf32>
    %104 = arith.addf %101, %103 : vector<16x64xf32>
    %105 = vector.extract_strided_slice %104 {offsets = [0, 0], sizes = [16, 32], strides = [1, 1]} : vector<16x64xf32> to vector<16x32xf32>
    %106 = vector.extract_strided_slice %104 {offsets = [0, 32], sizes = [16, 32], strides = [1, 1]} : vector<16x64xf32> to vector<16x32xf32>
    %107 = vector.extract_strided_slice %99 {offsets = [0, 0], sizes = [16, 8], strides = [1, 1]} : vector<16x32xf32> to vector<16x8xf32>
    %108 = vector.extract_strided_slice %99 {offsets = [0, 8], sizes = [16, 8], strides = [1, 1]} : vector<16x32xf32> to vector<16x8xf32>
    %109 = vector.extract_strided_slice %99 {offsets = [0, 16], sizes = [16, 8], strides = [1, 1]} : vector<16x32xf32> to vector<16x8xf32>
    %110 = vector.extract_strided_slice %99 {offsets = [0, 24], sizes = [16, 8], strides = [1, 1]} : vector<16x32xf32> to vector<16x8xf32>
    %111 = vector.shape_cast %107 : vector<16x8xf32> to vector<1x16x8xf32>
    %112 = vector.shape_cast %108 : vector<16x8xf32> to vector<1x16x8xf32>
    %113 = vector.shape_cast %109 : vector<16x8xf32> to vector<1x16x8xf32>
    %114 = vector.shape_cast %110 : vector<16x8xf32> to vector<1x16x8xf32>
    %115 = tpu.concatenate %111, %112, %113, %114 in 0 : vector<1x16x8xf32>, vector<1x16x8xf32>, vector<1x16x8xf32>, vector<1x16x8xf32> -> vector<4x16x8xf32>
    %116 = vector.extract_strided_slice %105 {offsets = [0, 0], sizes = [16, 8], strides = [1, 1]} : vector<16x32xf32> to vector<16x8xf32>
    %117 = vector.extract_strided_slice %105 {offsets = [0, 8], sizes = [16, 8], strides = [1, 1]} : vector<16x32xf32> to vector<16x8xf32>
    %118 = vector.extract_strided_slice %105 {offsets = [0, 16], sizes = [16, 8], strides = [1, 1]} : vector<16x32xf32> to vector<16x8xf32>
    %119 = vector.extract_strided_slice %105 {offsets = [0, 24], sizes = [16, 8], strides = [1, 1]} : vector<16x32xf32> to vector<16x8xf32>
    %120 = vector.shape_cast %116 : vector<16x8xf32> to vector<1x16x8xf32>
    %121 = vector.shape_cast %117 : vector<16x8xf32> to vector<1x16x8xf32>
    %122 = vector.shape_cast %118 : vector<16x8xf32> to vector<1x16x8xf32>
    %123 = vector.shape_cast %119 : vector<16x8xf32> to vector<1x16x8xf32>
    %124 = tpu.concatenate %120, %121, %122, %123 in 0 : vector<1x16x8xf32>, vector<1x16x8xf32>, vector<1x16x8xf32>, vector<1x16x8xf32> -> vector<4x16x8xf32>
    %125 = vector.extract_strided_slice %106 {offsets = [0, 0], sizes = [16, 8], strides = [1, 1]} : vector<16x32xf32> to vector<16x8xf32>
    %126 = vector.extract_strided_slice %106 {offsets = [0, 8], sizes = [16, 8], strides = [1, 1]} : vector<16x32xf32> to vector<16x8xf32>
    %127 = vector.extract_strided_slice %106 {offsets = [0, 16], sizes = [16, 8], strides = [1, 1]} : vector<16x32xf32> to vector<16x8xf32>
    %128 = vector.extract_strided_slice %106 {offsets = [0, 24], sizes = [16, 8], strides = [1, 1]} : vector<16x32xf32> to vector<16x8xf32>
    %129 = vector.shape_cast %125 : vector<16x8xf32> to vector<1x16x8xf32>
    %130 = vector.shape_cast %126 : vector<16x8xf32> to vector<1x16x8xf32>
    %131 = vector.shape_cast %127 : vector<16x8xf32> to vector<1x16x8xf32>
    %132 = vector.shape_cast %128 : vector<16x8xf32> to vector<1x16x8xf32>
    %133 = tpu.concatenate %129, %130, %131, %132 in 0 : vector<1x16x8xf32>, vector<1x16x8xf32>, vector<1x16x8xf32>, vector<1x16x8xf32> -> vector<4x16x8xf32>
    "tpu.trace_start"() <{level = 10 : i32, message = "hqd,hkd->hqk"}> : () -> ()
    %cst_32 = arith.constant dense<0.000000e+00> : vector<4x16x16xf32>
    %134 = tpu.matmul %115, %124, %cst_32 {dimension_numbers = #tpu.dot_dimension_numbers<[2], [2], [1], [1], [0, 0, 0, 1, 1, 1], [0], [0]>} : vector<4x16x8xf32>, vector<4x16x8xf32>, vector<4x16x16xf32> -> vector<4x16x16xf32>
    "tpu.trace_stop"() : () -> ()
    %cst_33 = arith.constant 0.353553385 : f32
    %135 = vector.broadcast %cst_33 : f32 to vector<4x16x16xf32>
    %136 = arith.mulf %134, %135 : vector<4x16x16xf32>
    %137 = vector.shape_cast %3 : vector<16x16xf32> to vector<1x16x16xf32>
    %138 = vector.broadcast %137 : vector<1x16x16xf32> to vector<4x16x16xf32>
    %139 = arith.addf %136, %138 : vector<4x16x16xf32>
    %cst_34 = arith.constant dense<0xFF800000> : vector<4x16xf32>
    %140 = vector.multi_reduction <maximumf>, %139, %cst_34 [2] : vector<4x16x16xf32> to vector<4x16xf32>
    %141 = vector.shape_cast %140 : vector<4x16xf32> to vector<4x16x1xf32>
    %142 = vector.broadcast %141 : vector<4x16x1xf32> to vector<4x16x16xf32>
    %143 = arith.subf %139, %142 : vector<4x16x16xf32>
    %144 = math.exp %143 : vector<4x16x16xf32>
    %cst_35 = arith.constant dense<0.000000e+00> : vector<4x16xf32>
    %145 = vector.multi_reduction <add>, %144, %cst_35 [2] : vector<4x16x16xf32> to vector<4x16xf32>
    %146 = vector.shape_cast %145 : vector<4x16xf32> to vector<4x16x1xf32>
    %147 = tpu.reciprocal %146 {approx = true} : vector<4x16x1xf32> -> vector<4x16x1xf32>
    %148 = vector.broadcast %147 : vector<4x16x1xf32> to vector<4x16x16xf32>
    %149 = arith.mulf %144, %148 : vector<4x16x16xf32>
    "tpu.trace_start"() <{level = 10 : i32, message = "hqk,hkd->hqd"}> : () -> ()
    %cst_36 = arith.constant dense<0.000000e+00> : vector<4x16x8xf32>
    %150 = tpu.matmul %149, %133, %cst_36 {dimension_numbers = #tpu.dot_dimension_numbers<[2], [1], [1], [2], [0, 0, 0, 1, 1, 2], [0], [0]>} : vector<4x16x16xf32>, vector<4x16x8xf32>, vector<4x16x8xf32> -> vector<4x16x8xf32>
    "tpu.trace_stop"() : () -> ()
    %151 = vector.extract_strided_slice %150 {offsets = [0, 0, 0], sizes = [1, 16, 8], strides = [1, 1, 1]} : vector<4x16x8xf32> to vector<1x16x8xf32>
    %152 = vector.shape_cast %151 : vector<1x16x8xf32> to vector<16x8xf32>
    %153 = vector.extract_strided_slice %150 {offsets = [1, 0, 0], sizes = [1, 16, 8], strides = [1, 1, 1]} : vector<4x16x8xf32> to vector<1x16x8xf32>
    %154 = vector.shape_cast %153 : vector<1x16x8xf32> to vector<16x8xf32>
    %155 = vector.extract_strided_slice %150 {offsets = [2, 0, 0], sizes = [1, 16, 8], strides = [1, 1, 1]} : vector<4x16x8xf32> to vector<1x16x8xf32>
    %156 = vector.shape_cast %155 : vector<1x16x8xf32> to vector<16x8xf32>
    %157 = vector.extract_strided_slice %150 {offsets = [3, 0, 0], sizes = [1, 16, 8], strides = [1, 1, 1]} : vector<4x16x8xf32> to vector<1x16x8xf32>
    %158 = vector.shape_cast %157 : vector<1x16x8xf32> to vector<16x8xf32>
    %159 = tpu.concatenate %152, %154, %156, %158 in 1 : vector<16x8xf32>, vector<16x8xf32>, vector<16x8xf32>, vector<16x8xf32> -> vector<16x32xf32>
    %c0_37 = arith.constant 0 : index
    %c224 = arith.constant 224 : index
    %160 = vector.load %arg2[%c0_37, %c224] : memref<32x320xf32, #tpu.memory_space<vmem>>, vector<32x32xf32>
    %cst_38 = arith.constant dense<0.000000e+00> : vector<16x32xf32>
    %161 = tpu.matmul %159, %160, %cst_38 {dimension_numbers = #tpu.dot_dimension_numbers<[1], [0], [0], [1], [0, 0, 1, 1], [], []>} : vector<16x32xf32>, vector<32x32xf32>, vector<16x32xf32> -> vector<16x32xf32>
    %c0_39 = arith.constant 0 : index
    %c224_40 = arith.constant 224 : index
    %162 = vector.load %arg4[%c0_39, %c224_40] : memref<1x544xf32, #tpu.memory_space<vmem>>, vector<1x32xf32>
    %163 = vector.broadcast %162 : vector<1x32xf32> to vector<16x32xf32>
    %164 = arith.addf %161, %163 : vector<16x32xf32>
    %165 = arith.addf %94, %164 : vector<16x32xf32>
    %c0_41 = arith.constant 0 : index
    %c416 = arith.constant 416 : index
    %166 = vector.load %arg4[%c0_41, %c416] : memref<1x544xf32, #tpu.memory_space<vmem>>, vector<1x32xf32>
    %c0_42 = arith.constant 0 : index
    %c448 = arith.constant 448 : index
    %167 = vector.load %arg4[%c0_42, %c448] : memref<1x544xf32, #tpu.memory_space<vmem>>, vector<1x32xf32>
    %cst_43 = arith.constant dense<0.000000e+00> : vector<16xf32>
    %168 = vector.multi_reduction <add>, %165, %cst_43 [1] : vector<16x32xf32> to vector<16xf32>
    %169 = vector.shape_cast %168 : vector<16xf32> to vector<16x1xf32>
    %cst_44 = arith.constant 3.200000e+01 : f32
    %170 = vector.broadcast %cst_44 : f32 to vector<16x1xf32>
    %171 = arith.divf %169, %170 : vector<16x1xf32>
    %172 = arith.mulf %165, %165 : vector<16x32xf32>
    %cst_45 = arith.constant dense<0.000000e+00> : vector<16xf32>
    %173 = vector.multi_reduction <add>, %172, %cst_45 [1] : vector<16x32xf32> to vector<16xf32>
    %174 = vector.shape_cast %173 : vector<16xf32> to vector<16x1xf32>
    %cst_46 = arith.constant 3.200000e+01 : f32
    %175 = vector.broadcast %cst_46 : f32 to vector<16x1xf32>
    %176 = arith.divf %174, %175 : vector<16x1xf32>
    %177 = arith.mulf %171, %171 : vector<16x1xf32>
    %178 = arith.subf %176, %177 : vector<16x1xf32>
    %179 = vector.broadcast %171 : vector<16x1xf32> to vector<16x32xf32>
    %180 = arith.subf %165, %179 : vector<16x32xf32>
    %cst_47 = arith.constant 9.99999974E-6 : f32
    %181 = vector.broadcast %cst_47 : f32 to vector<16x1xf32>
    %182 = arith.addf %178, %181 : vector<16x1xf32>
    %183 = math.rsqrt %182 : vector<16x1xf32>
    %184 = vector.broadcast %183 : vector<16x1xf32> to vector<16x32xf32>
    %185 = arith.mulf %180, %184 : vector<16x32xf32>
    %186 = vector.broadcast %166 : vector<1x32xf32> to vector<16x32xf32>
    %187 = arith.mulf %185, %186 : vector<16x32xf32>
    %188 = vector.broadcast %167 : vector<1x32xf32> to vector<16x32xf32>
    %189 = arith.addf %187, %188 : vector<16x32xf32>
    %c0_48 = arith.constant 0 : index
    %c256 = arith.constant 256 : index
    %190 = vector.load %arg2[%c0_48, %c256] : memref<32x320xf32, #tpu.memory_space<vmem>>, vector<32x64xf32>
    %cst_49 = arith.constant dense<0.000000e+00> : vector<16x64xf32>
    %191 = tpu.matmul %189, %190, %cst_49 {dimension_numbers = #tpu.dot_dimension_numbers<[1], [0], [0], [1], [0, 0, 1, 1], [], []>} : vector<16x32xf32>, vector<32x64xf32>, vector<16x64xf32> -> vector<16x64xf32>
    %c0_50 = arith.constant 0 : index
    %c256_51 = arith.constant 256 : index
    %192 = vector.load %arg4[%c0_50, %c256_51] : memref<1x544xf32, #tpu.memory_space<vmem>>, vector<1x64xf32>
    %193 = vector.broadcast %192 : vector<1x64xf32> to vector<16x64xf32>
    %194 = arith.addf %191, %193 : vector<16x64xf32>
    %cst_52 = arith.constant 0.000000e+00 : f32
    %195 = vector.broadcast %cst_52 : f32 to vector<16x64xf32>
    %196 = arith.maximumf %194, %195 : vector<16x64xf32>
    %c0_53 = arith.constant 0 : index
    %c0_54 = arith.constant 0 : index
    %197 = vector.load %arg3[%c0_53, %c0_54] : memref<64x32xf32, #tpu.memory_space<vmem>>, vector<64x32xf32>
    %cst_55 = arith.constant dense<0.000000e+00> : vector<16x32xf32>
    %198 = tpu.matmul %196, %197, %cst_55 {dimension_numbers = #tpu.dot_dimension_numbers<[1], [0], [0], [1], [0, 0, 1, 1], [], []>} : vector<16x64xf32>, vector<64x32xf32>, vector<16x32xf32> -> vector<16x32xf32>
    %c0_56 = arith.constant 0 : index
    %c320 = arith.constant 320 : index
    %199 = vector.load %arg4[%c0_56, %c320] : memref<1x544xf32, #tpu.memory_space<vmem>>, vector<1x32xf32>
    %200 = vector.broadcast %199 : vector<1x32xf32> to vector<16x32xf32>
    %201 = arith.addf %198, %200 : vector<16x32xf32>
    %202 = arith.addf %189, %201 : vector<16x32xf32>
    %c0_57 = arith.constant 0 : index
    %c480 = arith.constant 480 : index
    %203 = vector.load %arg4[%c0_57, %c480] : memref<1x544xf32, #tpu.memory_space<vmem>>, vector<1x32xf32>
    %c0_58 = arith.constant 0 : index
    %c512 = arith.constant 512 : index
    %204 = vector.load %arg4[%c0_58, %c512] : memref<1x544xf32, #tpu.memory_space<vmem>>, vector<1x32xf32>
    %cst_59 = arith.constant dense<0.000000e+00> : vector<16xf32>
    %205 = vector.multi_reduction <add>, %202, %cst_59 [1] : vector<16x32xf32> to vector<16xf32>
    %206 = vector.shape_cast %205 : vector<16xf32> to vector<16x1xf32>
    %cst_60 = arith.constant 3.200000e+01 : f32
    %207 = vector.broadcast %cst_60 : f32 to vector<16x1xf32>
    %208 = arith.divf %206, %207 : vector<16x1xf32>
    %209 = arith.mulf %202, %202 : vector<16x32xf32>
    %cst_61 = arith.constant dense<0.000000e+00> : vector<16xf32>
    %210 = vector.multi_reduction <add>, %209, %cst_61 [1] : vector<16x32xf32> to vector<16xf32>
    %211 = vector.shape_cast %210 : vector<16xf32> to vector<16x1xf32>
    %cst_62 = arith.constant 3.200000e+01 : f32
    %212 = vector.broadcast %cst_62 : f32 to vector<16x1xf32>
    %213 = arith.divf %211, %212 : vector<16x1xf32>
    %214 = arith.mulf %208, %208 : vector<16x1xf32>
    %215 = arith.subf %213, %214 : vector<16x1xf32>
    %216 = vector.broadcast %208 : vector<16x1xf32> to vector<16x32xf32>
    %217 = arith.subf %202, %216 : vector<16x32xf32>
    %cst_63 = arith.constant 9.99999974E-6 : f32
    %218 = vector.broadcast %cst_63 : f32 to vector<16x1xf32>
    %219 = arith.addf %215, %218 : vector<16x1xf32>
    %220 = math.rsqrt %219 : vector<16x1xf32>
    %221 = vector.broadcast %220 : vector<16x1xf32> to vector<16x32xf32>
    %222 = arith.mulf %217, %221 : vector<16x32xf32>
    %223 = vector.broadcast %203 : vector<1x32xf32> to vector<16x32xf32>
    %224 = arith.mulf %222, %223 : vector<16x32xf32>
    %225 = vector.broadcast %204 : vector<1x32xf32> to vector<16x32xf32>
    %226 = arith.addf %224, %225 : vector<16x32xf32>
    %c0_64 = arith.constant 0 : index
    %c0_65 = arith.constant 0 : index
    %227 = vector.load %arg5[%c0_64, %c0_65] : memref<16x32xf32, #tpu.memory_space<vmem>>, vector<16x32xf32>
    tpu.vector_store %arg5[%c0_64, %c0_65], %226 {strides = array<i32>} : memref<16x32xf32, #tpu.memory_space<vmem>>, vector<16x32xf32>,
    return
  }
  func.func @transform_0(%arg0: i32) -> (i32, i32) {
    %c0_i32 = arith.constant 0 : i32
    %c0_i32_0 = arith.constant 0 : i32
    %c0_i32_1 = arith.constant 0 : i32
    return %c0_i32, %c0_i32_0 : i32, i32
  }
  func.func @transform_1(%arg0: i32) -> (i32, i32) {
    %c0_i32 = arith.constant 0 : i32
    %c0_i32_0 = arith.constant 0 : i32
    %c0_i32_1 = arith.constant 0 : i32
    return %c0_i32, %c0_i32_0 : i32, i32
  }
  func.func @transform_2(%arg0: i32) -> (i32, i32) {
    %c0_i32 = arith.constant 0 : i32
    %c0_i32_0 = arith.constant 0 : i32
    %c0_i32_1 = arith.constant 0 : i32
    return %c0_i32, %c0_i32_0 : i32, i32
  }
  func.func @transform_3(%arg0: i32) -> (i32, i32) {
    %c0_i32 = arith.constant 0 : i32
    %c0_i32_0 = arith.constant 0 : i32
    %c0_i32_1 = arith.constant 0 : i32
    return %c0_i32, %c0_i32_0 : i32, i32
  }
  func.func @transform_4(%arg0: i32) -> (i32, i32) {
    %c0_i32 = arith.constant 0 : i32
    %c0_i32_0 = arith.constant 0 : i32
    %c0_i32_1 = arith.constant 0 : i32
    return %c0_i32, %c0_i32_0 : i32, i32
  }
}

</mosaic_0001>

<llo_original>
// kernel: decoder_layer.1
$region0: #{decoder_layer.1}
  #allocation0 [shape = 'u32[]', space=smem, size = 0x4, offset = 0x4, fixed_abs, tag = 'smem constant byte address 0x4 - core index']
  #allocation1 [shape = 'u32[72,128]{1,0:T(1,128)}', space=vmem, size = 0x9000, scoped, tag = 'internal scratch']
  %s0 = inlined_call_operand.vmem [shape: f32[16,96], index: 0, kind: input, shape index: {}]
  %s1 = inlined_call_operand.vmem [shape: f32[32,320], index: 1, kind: input, shape index: {}]
  %s2 = inlined_call_operand.vmem [shape: f32[64,32], index: 2, kind: input, shape index: {}]
  %s3 = inlined_call_operand.vmem [shape: f32[1,544], index: 3, kind: input, shape index: {}]
  %s4 = inlined_call_operand.hbm [shape: f32[16,32], index: 4, kind: output, shape index: {}]
  %s5 = sld [smem:[#allocation0]]
  $region26: #{decoder_layer.1} parent=0
    _
  %s7 = ssub.s32 1, %s5
  %s8 = scalar_select 0, %s7, %s5
  $region1: #{decoder_layer.1} parent=0
    #allocation2 [shape = 'u8[8192]{0}', space=vmem, size = 0x2000, scoped, tag = 'output window, operand 0, single buffered']
    #allocation3 [shape = 's32[1]{0}', space=sflag, size = 0x4, scoped, tag = 'scoped memory for decoder_layer.1']
    %9 = vsyncpa [#allocation3], 0
    // Predicated region
    $region2: #{decoder_layer.1} parent=1 // pred_check
      _
    $region3: #{decoder_layer.1} parent=1 // pred_check_branch
      %11 = sbr.rel (0) target = $region5
    $region4: #{decoder_layer.1} parent=1 // pred_region
      _
    $region5: #{decoder_layer.1} parent=1 // pred_fallthru
      _
    // Predicated region
    $region6: #{decoder_layer.1} parent=1 // pred_check
      _
    $region7: #{decoder_layer.1} parent=1 // pred_check_branch
      %13 = sbr.rel (0) target = $region9
    $region8: #{decoder_layer.1} parent=1 // pred_region
      _
    $region9: #{decoder_layer.1} parent=1 // pred_fallthru
      _
    // Predicated region
    $region10: #{decoder_layer.1} parent=1 // pred_check
      _
    $region11: #{decoder_layer.1} parent=1 // pred_check_branch
      %15 = sbr.rel (0) target = $region13
    $region12: #{decoder_layer.1} parent=1 // pred_region
      _
    $region13: #{decoder_layer.1} parent=1 // pred_fallthru
      _
    // Predicated region
    $region14: #{decoder_layer.1} parent=1 // pred_check
      _
    $region15: #{decoder_layer.1} parent=1 // pred_check_branch
      %17 = sbr.rel (0) target = $region17
    $region16: #{decoder_layer.1} parent=1 // pred_region
      _
    $region17: #{decoder_layer.1} parent=1 // pred_fallthru
      _
    %v18 = vld [vmem:[%s0] sm:$0xff]
    %v19 = vld [vmem:[%s0 + $0x8] sm:$0xff]
    %v20 = vld [vmem:[%s1] sm:$0xff]
    %v21 = vld [vmem:[%s1 + $0x18] sm:$0xff]
    %v22 = vld [vmem:[%s1 + $0x30] sm:$0xff]
    %v23 = vld [vmem:[%s1 + $0x48] sm:$0xff]
    %v24 = vld [vmem:[%s3] sm:$0x1]
    %v26 = vperm.slane %v24, 0
    %vm28 = vcmask 261120
    %v30 = vsel %vm28, %v18, 0
    %v33 = vsel %vm28, %v19, 0
    %35 = vmatpush.msra.mxu0 0.0
    %36 = vmatpush.msra.mxu0 0.0
    %37 = vmatpush.msra.mxu0 0.0
    %38 = vmatpush.msra.mxu0 0.0
    %39 = vmatpush.msra.mxu0 0.0
    %40 = vmatpush.msra.mxu0 0.0
    %41 = vmatpush.msra.mxu0 0.0
    %42 = vmatpush.msra.mxu0 0.0
    %43 = vmatpush.msra.mxu0 0.0
    %44 = vmatpush.msra.mxu0 0.0
    %45 = vmatpush.msra.mxu0 0.0
    %46 = vmatpush.msra.mxu0 0.0
    %47 = vmatpush.msra.mxu0 %v23
    %48 = vmatpush.msra.mxu0 %v22
    %49 = vmatpush.msra.mxu0 %v21
    %50 = vmatpush.msra.mxu0 %v20
    %51 = vmatmul.f32.gmra.mxu0 %v30
    %v52 = vpop.f32.mrf.mxu0
    %v53 = vadd.f32 %v26, %v52
    %54 = vmatmul.f32.gmra.mxu0 %v33
    %v55 = vpop.f32.mrf.mxu0
    %v56 = vadd.f32 %v26, %v55
    %57 = vdwg.mxu0
    %60 = vrot.lane.b32.xlu0 %v53, 120
    %v61 = vpop.permute.xlu0 %60
    %62 = vrot.lane.b32.xlu0 %v56, 120
    %v63 = vpop.permute.xlu0 %62
    %64 = vrot.lane.b32.xlu0 %v53, 112
    %v65 = vpop.permute.xlu0 %64
    %66 = vrot.lane.b32.xlu0 %v56, 112
    %v67 = vpop.permute.xlu0 %66
    %68 = vrot.lane.b32.xlu0 %v53, 104
    %v69 = vpop.permute.xlu0 %68
    %70 = vrot.lane.b32.xlu0 %v56, 104
    %v71 = vpop.permute.xlu0 %70
    %72 = vrot.lane.b32.xlu0 %v53, 96
    %v73 = vpop.permute.xlu0 %72
    %74 = vrot.lane.b32.xlu0 %v56, 96
    %v75 = vpop.permute.xlu0 %74
    %vm76 = vcmask 64512
    %v77 = vsel %vm76, %v53, 0
    %v79 = vsel %vm76, %v56, 0
    %v81 = vsel %vm76, %v73, 0
    %v83 = vsel %vm76, %v75, 0
    %85 = vmatpush.xpose.msra.mxu0 0.0
    %86 = vmatpush.xpose.msra.mxu0 0.0
    %87 = vmatpush.xpose.msra.mxu0 0.0
    %88 = vmatpush.xpose.msra.mxu0 0.0
    %89 = vmatpush.xpose.msra.mxu0 0.0
    %90 = vmatpush.xpose.msra.mxu0 0.0
    %91 = vmatpush.xpose.msra.mxu0 0.0
    %92 = vmatpush.xpose.msra.mxu0 0.0
    %93 = vmatpush.xpose.msra.mxu0 0.0
    %94 = vmatpush.xpose.msra.mxu0 0.0
    %95 = vmatpush.xpose.msra.mxu0 0.0
    %96 = vmatpush.xpose.msra.mxu0 0.0
    %97 = vmatpush.xpose.msra.mxu0 0.0
    %98 = vmatpush.xpose.msra.mxu0 0.0
    %99 = vmatpush.xpose.msra.mxu0 %v83
    %100 = vmatpush.xpose.msra.mxu0 %v81
    %101 = vmatmul.f32.gmra.mxu0 %v77
    %v102 = vpop.f32.mrf.mxu0
    %v103 = vadd.f32 0.0, %v102
    %104 = vmatmul.f32.gmra.mxu0 %v79
    %v105 = vpop.f32.mrf.mxu0
    %v106 = vadd.f32 0.0, %v105
    %107 = vdwg.mxu0
    %108 = vrot.lane.b32.xlu0 %v61, 96
    %v109 = vpop.permute.xlu0 %108
    %110 = vrot.lane.b32.xlu0 %v63, 96
    %v111 = vpop.permute.xlu0 %110
    %v112 = vsel %vm76, %v61, 0
    %v114 = vsel %vm76, %v63, 0
    %v116 = vsel %vm76, %v109, 0
    %v118 = vsel %vm76, %v111, 0
    %120 = vmatpush.xpose.msra.mxu0 0.0
    %121 = vmatpush.xpose.msra.mxu0 0.0
    %122 = vmatpush.xpose.msra.mxu0 0.0
    %123 = vmatpush.xpose.msra.mxu0 0.0
    %124 = vmatpush.xpose.msra.mxu0 0.0
    %125 = vmatpush.xpose.msra.mxu0 0.0
    %126 = vmatpush.xpose.msra.mxu0 0.0
    %127 = vmatpush.xpose.msra.mxu0 0.0
    %128 = vmatpush.xpose.msra.mxu0 0.0
    %129 = vmatpush.xpose.msra.mxu0 0.0
    %130 = vmatpush.xpose.msra.mxu0 0.0
    %131 = vmatpush.xpose.msra.mxu0 0.0
    %132 = vmatpush.xpose.msra.mxu0 0.0
    %133 = vmatpush.xpose.msra.mxu0 0.0
    %134 = vmatpush.xpose.msra.mxu0 %v118
    %135 = vmatpush.xpose.msra.mxu0 %v116
    %136 = vmatmul.f32.gmra.mxu0 %v112
    %v137 = vpop.f32.mrf.mxu0
    %v138 = vadd.f32 0.0, %v137
    %139 = vmatmul.f32.gmra.mxu0 %v114
    %v140 = vpop.f32.mrf.mxu0
    %v141 = vadd.f32 0.0, %v140
    %142 = vdwg.mxu0
    %143 = vrot.lane.b32.xlu0 %v65, 96
    %v144 = vpop.permute.xlu0 %143
    %145 = vrot.lane.b32.xlu0 %v67, 96
    %v146 = vpop.permute.xlu0 %145
    %v147 = vsel %vm76, %v65, 0
    %v149 = vsel %vm76, %v67, 0
    %v151 = vsel %vm76, %v144, 0
    %v153 = vsel %vm76, %v146, 0
    %155 = vmatpush.xpose.msra.mxu0 0.0
    %156 = vmatpush.xpose.msra.mxu0 0.0
    %157 = vmatpush.xpose.msra.mxu0 0.0
    %158 = vmatpush.xpose.msra.mxu0 0.0
    %159 = vmatpush.xpose.msra.mxu0 0.0
    %160 = vmatpush.xpose.msra.mxu0 0.0
    %161 = vmatpush.xpose.msra.mxu0 0.0
    %162 = vmatpush.xpose.msra.mxu0 0.0
    %163 = vmatpush.xpose.msra.mxu0 0.0
    %164 = vmatpush.xpose.msra.mxu0 0.0
    %165 = vmatpush.xpose.msra.mxu0 0.0
    %166 = vmatpush.xpose.msra.mxu0 0.0
    %167 = vmatpush.xpose.msra.mxu0 0.0
    %168 = vmatpush.xpose.msra.mxu0 0.0
    %169 = vmatpush.xpose.msra.mxu0 %v153
    %170 = vmatpush.xpose.msra.mxu0 %v151
    %171 = vmatmul.f32.gmra.mxu0 %v147
    %v172 = vpop.f32.mrf.mxu0
    %v173 = vadd.f32 0.0, %v172
    %174 = vmatmul.f32.gmra.mxu0 %v149
    %v175 = vpop.f32.mrf.mxu0
    %v176 = vadd.f32 0.0, %v175
    %177 = vdwg.mxu0
    %178 = vrot.lane.b32.xlu0 %v69, 96
    %v179 = vpop.permute.xlu0 %178
    %180 = vrot.lane.b32.xlu0 %v71, 96
    %v181 = vpop.permute.xlu0 %180
    %v182 = vsel %vm76, %v69, 0
    %v184 = vsel %vm76, %v71, 0
    %v186 = vsel %vm76, %v179, 0
    %v188 = vsel %vm76, %v181, 0
    %190 = vmatpush.xpose.msra.mxu0 0.0
    %191 = vmatpush.xpose.msra.mxu0 0.0
    %192 = vmatpush.xpose.msra.mxu0 0.0
    %193 = vmatpush.xpose.msra.mxu0 0.0
    %194 = vmatpush.xpose.msra.mxu0 0.0
    %195 = vmatpush.xpose.msra.mxu0 0.0
    %196 = vmatpush.xpose.msra.mxu0 0.0
    %197 = vmatpush.xpose.msra.mxu0 0.0
    %198 = vmatpush.xpose.msra.mxu0 0.0
    %199 = vmatpush.xpose.msra.mxu0 0.0
    %200 = vmatpush.xpose.msra.mxu0 0.0
    %201 = vmatpush.xpose.msra.mxu0 0.0
    %202 = vmatpush.xpose.msra.mxu0 0.0
    %203 = vmatpush.xpose.msra.mxu0 0.0
    %204 = vmatpush.xpose.msra.mxu0 %v188
    %205 = vmatpush.xpose.msra.mxu0 %v186
    %206 = vmatmul.f32.gmra.mxu0 %v182
    %v207 = vpop.f32.mrf.mxu0
    %v208 = vadd.f32 0.0, %v207
    %209 = vmatmul.f32.gmra.mxu0 %v184
    %v210 = vpop.f32.mrf.mxu0
    %v211 = vadd.f32 0.0, %v210
    %212 = vdwg.mxu0
    %v213 = vmul.f32 %v103, 0.35355338
    %v214 = vmul.f32 %v106, 0.35355338
    %v215 = vmul.f32 %v138, 0.35355338
    %v216 = vmul.f32 %v141, 0.35355338
    %v217 = vmul.f32 %v173, 0.35355338
    %v218 = vmul.f32 %v176, 0.35355338
    %v219 = vmul.f32 %v208, 0.35355338
    %v220 = vmul.f32 %v211, 0.35355338
    %221 = vrot.lane.b32.xlu0 %v18, 64
    %v222 = vpop.permute.xlu0 %221
    %223 = vrot.lane.b32.xlu0 %v19, 64
    %v224 = vpop.permute.xlu0 %223
    %v227 = vadd.f32 %v213, %v222
    %v228 = vadd.f32 %v214, %v224
    %v229 = vadd.f32 %v215, %v222
    %v230 = vadd.f32 %v216, %v224
    %v231 = vadd.f32 %v217, %v222
    %v232 = vadd.f32 %v218, %v224
    %v233 = vadd.f32 %v219, %v222
    %v234 = vadd.f32 %v220, %v224
    %vm235 = vcmask 130048
    %v236 = vsel %vm235, %v227, -inf
    %237 = vmax.xlane.f32.xlu0 %v236
    %v238 = vpop.xlane.xlu0 %237
    %v239 = vsel %vm235, %v228, -inf
    %240 = vmax.xlane.f32.xlu0 %v239
    %v241 = vpop.xlane.xlu0 %240
    %v242 = vsel %vm235, %v229, -inf
    %243 = vmax.xlane.f32.xlu0 %v242
    %v244 = vpop.xlane.xlu0 %243
    %v245 = vsel %vm235, %v230, -inf
    %246 = vmax.xlane.f32.xlu0 %v245
    %v247 = vpop.xlane.xlu0 %246
    %v248 = vsel %vm235, %v231, -inf
    %249 = vmax.xlane.f32.xlu0 %v248
    %v250 = vpop.xlane.xlu0 %249
    %v251 = vsel %vm235, %v232, -inf
    %252 = vmax.xlane.f32.xlu0 %v251
    %v253 = vpop.xlane.xlu0 %252
    %v254 = vsel %vm235, %v233, -inf
    %255 = vmax.xlane.f32.xlu0 %v254
    %v256 = vpop.xlane.xlu0 %255
    %v257 = vsel %vm235, %v234, -inf
    %258 = vmax.xlane.f32.xlu0 %v257
    %v259 = vpop.xlane.xlu0 %258
    %v260 = vsub.f32 %v227, %v238
    %v261 = vsub.f32 %v228, %v241
    %v262 = vsub.f32 %v229, %v244
    %v263 = vsub.f32 %v230, %v247
    %v264 = vsub.f32 %v231, %v250
    %v265 = vsub.f32 %v232, %v253
    %v266 = vsub.f32 %v233, %v256
    %v267 = vsub.f32 %v234, %v259
    %v268 = vmul.f32 %v260, 1.442695
    %v269 = vpow.pop %v268
    %v270 = vmul.f32 %v261, 1.442695
    %v271 = vpow.pop %v270
    %v272 = vmul.f32 %v262, 1.442695
    %v273 = vpow.pop %v272
    %v274 = vmul.f32 %v263, 1.442695
    %v275 = vpow.pop %v274
    %v276 = vmul.f32 %v264, 1.442695
    %v277 = vpow.pop %v276
    %v278 = vmul.f32 %v265, 1.442695
    %v279 = vpow.pop %v278
    %v280 = vmul.f32 %v266, 1.442695
    %v281 = vpow.pop %v280
    %v282 = vmul.f32 %v267, 1.442695
    %v283 = vpow.pop %v282
    %v284 = vsel %vm235, %v269, 0.0
    %285 = vadd.xlane.f32.xlu0 %v284
    %v286 = vpop.xlane.xlu0 %285
    %v287 = vsel %vm235, %v271, 0.0
    %288 = vadd.xlane.f32.xlu0 %v287
    %v289 = vpop.xlane.xlu0 %288
    %v290 = vsel %vm235, %v273, 0.0
    %291 = vadd.xlane.f32.xlu0 %v290
    %v292 = vpop.xlane.xlu0 %291
    %v293 = vsel %vm235, %v275, 0.0
    %294 = vadd.xlane.f32.xlu0 %v293
    %v295 = vpop.xlane.xlu0 %294
    %v296 = vsel %vm235, %v277, 0.0
    %297 = vadd.xlane.f32.xlu0 %v296
    %v298 = vpop.xlane.xlu0 %297
    %v299 = vsel %vm235, %v279, 0.0
    %300 = vadd.xlane.f32.xlu0 %v299
    %v301 = vpop.xlane.xlu0 %300
    %v302 = vsel %vm235, %v281, 0.0
    %303 = vadd.xlane.f32.xlu0 %v302
    %v304 = vpop.xlane.xlu0 %303
    %v305 = vsel %vm235, %v283, 0.0
    %306 = vadd.xlane.f32.xlu0 %v305
    %v307 = vpop.xlane.xlu0 %306
    %v308 = vrcp.pop %v286
    %v309 = vrcp.pop %v289
    %v310 = vrcp.pop %v292
    %v311 = vrcp.pop %v295
    %v312 = vrcp.pop %v298
    %v313 = vrcp.pop %v301
    %v314 = vrcp.pop %v304
    %v315 = vrcp.pop %v307
    %v316 = vmul.f32 %v269, %v308
    %v317 = vmul.f32 %v271, %v309
    %v318 = vmul.f32 %v273, %v310
    %v319 = vmul.f32 %v275, %v311
    %v320 = vmul.f32 %v277, %v312
    %v321 = vmul.f32 %v279, %v313
    %v322 = vmul.f32 %v281, %v314
    %v323 = vmul.f32 %v283, %v315
    %324 = vrot.lane.b32.xlu0 %v53, 64
    %v325 = vpop.permute.xlu0 %324
    %326 = vrot.lane.b32.xlu0 %v56, 64
    %v327 = vpop.permute.xlu0 %326
    %v331 = vsel %vm235, %v316, 0
    %v334 = vsel %vm235, %v317, 0
    %336 = vmatpush.msra.mxu0 0.0
    %337 = vmatpush.msra.mxu0 0.0
    %338 = vmatpush.msra.mxu0 0.0
    %339 = vmatpush.msra.mxu0 0.0
    %340 = vmatpush.msra.mxu0 0.0
    %341 = vmatpush.msra.mxu0 0.0
    %342 = vmatpush.msra.mxu0 0.0
    %343 = vmatpush.msra.mxu0 0.0
    %344 = vmatpush.msra.mxu0 0.0
    %345 = vmatpush.msra.mxu0 0.0
    %346 = vmatpush.msra.mxu0 0.0
    %347 = vmatpush.msra.mxu0 0.0
    %348 = vmatpush.msra.mxu0 0.0
    %349 = vmatpush.msra.mxu0 0.0
    %350 = vmatpush.msra.mxu0 %v327
    %351 = vmatpush.msra.mxu0 %v325
    %352 = vmatmul.f32.gmra.mxu0 %v331
    %v353 = vpop.f32.mrf.mxu0
    %v354 = vadd.f32 0.0, %v353
    %355 = vmatmul.f32.gmra.mxu0 %v334
    %v356 = vpop.f32.mrf.mxu0
    %v357 = vadd.f32 0.0, %v356
    %358 = vdwg.mxu0
    %359 = vrot.lane.b32.xlu0 %v61, 64
    %v360 = vpop.permute.xlu0 %359
    %361 = vrot.lane.b32.xlu0 %v63, 64
    %v362 = vpop.permute.xlu0 %361
    %v366 = vsel %vm235, %v318, 0
    %v369 = vsel %vm235, %v319, 0
    %371 = vmatpush.msra.mxu0 0.0
    %372 = vmatpush.msra.mxu0 0.0
    %373 = vmatpush.msra.mxu0 0.0
    %374 = vmatpush.msra.mxu0 0.0
    %375 = vmatpush.msra.mxu0 0.0
    %376 = vmatpush.msra.mxu0 0.0
    %377 = vmatpush.msra.mxu0 0.0
    %378 = vmatpush.msra.mxu0 0.0
    %379 = vmatpush.msra.mxu0 0.0
    %380 = vmatpush.msra.mxu0 0.0
    %381 = vmatpush.msra.mxu0 0.0
    %382 = vmatpush.msra.mxu0 0.0
    %383 = vmatpush.msra.mxu0 0.0
    %384 = vmatpush.msra.mxu0 0.0
    %385 = vmatpush.msra.mxu0 %v362
    %386 = vmatpush.msra.mxu0 %v360
    %387 = vmatmul.f32.gmra.mxu0 %v366
    %v388 = vpop.f32.mrf.mxu0
    %v389 = vadd.f32 0.0, %v388
    %390 = vmatmul.f32.gmra.mxu0 %v369
    %v391 = vpop.f32.mrf.mxu0
    %v392 = vadd.f32 0.0, %v391
    %393 = vdwg.mxu0
    %394 = vrot.lane.b32.xlu0 %v65, 64
    %v395 = vpop.permute.xlu0 %394
    %396 = vrot.lane.b32.xlu0 %v67, 64
    %v397 = vpop.permute.xlu0 %396
    %v401 = vsel %vm235, %v320, 0
    %v404 = vsel %vm235, %v321, 0
    %406 = vmatpush.msra.mxu0 0.0
    %407 = vmatpush.msra.mxu0 0.0
    %408 = vmatpush.msra.mxu0 0.0
    %409 = vmatpush.msra.mxu0 0.0
    %410 = vmatpush.msra.mxu0 0.0
    %411 = vmatpush.msra.mxu0 0.0
    %412 = vmatpush.msra.mxu0 0.0
    %413 = vmatpush.msra.mxu0 0.0
    %414 = vmatpush.msra.mxu0 0.0
    %415 = vmatpush.msra.mxu0 0.0
    %416 = vmatpush.msra.mxu0 0.0
    %417 = vmatpush.msra.mxu0 0.0
    %418 = vmatpush.msra.mxu0 0.0
    %419 = vmatpush.msra.mxu0 0.0
    %420 = vmatpush.msra.mxu0 %v397
    %421 = vmatpush.msra.mxu0 %v395
    %422 = vmatmul.f32.gmra.mxu0 %v401
    %v423 = vpop.f32.mrf.mxu0
    %v424 = vadd.f32 0.0, %v423
    %425 = vmatmul.f32.gmra.mxu0 %v404
    %v426 = vpop.f32.mrf.mxu0
    %v427 = vadd.f32 0.0, %v426
    %428 = vdwg.mxu0
    %429 = vrot.lane.b32.xlu0 %v69, 64
    %v430 = vpop.permute.xlu0 %429
    %431 = vrot.lane.b32.xlu0 %v71, 64
    %v432 = vpop.permute.xlu0 %431
    %v436 = vsel %vm235, %v322, 0
    %v439 = vsel %vm235, %v323, 0
    %441 = vmatpush.msra.mxu0 0.0
    %442 = vmatpush.msra.mxu0 0.0
    %443 = vmatpush.msra.mxu0 0.0
    %444 = vmatpush.msra.mxu0 0.0
    %445 = vmatpush.msra.mxu0 0.0
    %446 = vmatpush.msra.mxu0 0.0
    %447 = vmatpush.msra.mxu0 0.0
    %448 = vmatpush.msra.mxu0 0.0
    %449 = vmatpush.msra.mxu0 0.0
    %450 = vmatpush.msra.mxu0 0.0
    %451 = vmatpush.msra.mxu0 0.0
    %452 = vmatpush.msra.mxu0 0.0
    %453 = vmatpush.msra.mxu0 0.0
    %454 = vmatpush.msra.mxu0 0.0
    %455 = vmatpush.msra.mxu0 %v432
    %456 = vmatpush.msra.mxu0 %v430
    %457 = vmatmul.f32.gmra.mxu0 %v436
    %v458 = vpop.f32.mrf.mxu0
    %v459 = vadd.f32 0.0, %v458
    %460 = vmatmul.f32.gmra.mxu0 %v439
    %v461 = vpop.f32.mrf.mxu0
    %v462 = vadd.f32 0.0, %v461
    %463 = vdwg.mxu0
    %466 = vrot.lane.b32.xlu0 %v389, 8
    %v467 = vpop.permute.xlu0 %466
    %468 = vrot.lane.b32.xlu0 %v392, 8
    %v469 = vpop.permute.xlu0 %468
    %474 = vrot.lane.b32.xlu0 %v424, 16
    %v475 = vpop.permute.xlu0 %474
    %476 = vrot.lane.b32.xlu0 %v427, 16
    %v477 = vpop.permute.xlu0 %476
    %482 = vrot.lane.b32.xlu0 %v459, 24
    %v483 = vpop.permute.xlu0 %482
    %484 = vrot.lane.b32.xlu0 %v462, 24
    %v485 = vpop.permute.xlu0 %484
    %v488 = vsel %vm76, %v354, %v467
    %v489 = vsel %vm76, %v357, %v469
    %v490 = vsel %vm235, %v488, %v475
    %v491 = vsel %vm235, %v489, %v477
    %vm492 = vcmask 195584
    %v493 = vsel %vm492, %v490, %v483
    %v494 = vsel %vm492, %v491, %v485
    %v495 = vld [vmem:[%s1] sm:$0xff]
    %v496 = vld [vmem:[%s1 + $0x18] sm:$0xff]
    %v497 = vld [vmem:[%s1 + $0x30] sm:$0xff]
    %v498 = vld [vmem:[%s1 + $0x48] sm:$0xff]
    %v499 = vld [vmem:[%s3] sm:$0x1]
    %v501 = vperm.slane %v499, 0
    %506 = vrot.lane.b32.xlu0 %v495, 32
    %v507 = vpop.permute.xlu0 %506
    %508 = vrot.lane.b32.xlu0 %v496, 32
    %v509 = vpop.permute.xlu0 %508
    %510 = vrot.lane.b32.xlu0 %v497, 32
    %v511 = vpop.permute.xlu0 %510
    %512 = vrot.lane.b32.xlu0 %v498, 32
    %v513 = vpop.permute.xlu0 %512
    %518 = vrot.lane.b32.xlu0 %v501, 32
    %v519 = vpop.permute.xlu0 %518
    %v522 = vsel %vm28, %v493, 0
    %v525 = vsel %vm28, %v494, 0
    %527 = vmatpush.msra.mxu0 0.0
    %528 = vmatpush.msra.mxu0 0.0
    %529 = vmatpush.msra.mxu0 0.0
    %530 = vmatpush.msra.mxu0 0.0
    %531 = vmatpush.msra.mxu0 0.0
    %532 = vmatpush.msra.mxu0 0.0
    %533 = vmatpush.msra.mxu0 0.0
    %534 = vmatpush.msra.mxu0 0.0
    %535 = vmatpush.msra.mxu0 0.0
    %536 = vmatpush.msra.mxu0 0.0
    %537 = vmatpush.msra.mxu0 0.0
    %538 = vmatpush.msra.mxu0 0.0
    %539 = vmatpush.msra.mxu0 %v513
    %540 = vmatpush.msra.mxu0 %v511
    %541 = vmatpush.msra.mxu0 %v509
    %542 = vmatpush.msra.mxu0 %v507
    %543 = vmatmul.f32.gmra.mxu0 %v522
    %v544 = vpop.f32.mrf.mxu0
    %v545 = vadd.f32 %v519, %v544
    %546 = vmatmul.f32.gmra.mxu0 %v525
    %v547 = vpop.f32.mrf.mxu0
    %v548 = vadd.f32 %v519, %v547
    %549 = vdwg.mxu0
    %v550 = vadd.f32 %v18, %v545
    %v551 = vadd.f32 %v19, %v548
    %v552 = vld [vmem:[%s3 + $0x2] sm:$0x1]
    %v553 = vld [vmem:[%s3 + $0x3] sm:$0x1]
    %v554 = vsel %vm28, %v550, 0.0
    %555 = vadd.xlane.f32.xlu0 %v554
    %v556 = vpop.xlane.xlu0 %555
    %v557 = vsel %vm28, %v551, 0.0
    %558 = vadd.xlane.f32.xlu0 %v557
    %v559 = vpop.xlane.xlu0 %558
    %v560 = vrcp.pop 32.0
    %v561 = vmul.f32 32.0, %v560
    %v562 = vsub.f32 1.0, %v561
    %v563 = vmul.f32 %v560, %v562
    %v564 = vadd.f32 %v560, %v563
    %vm565 = vweird.f32 %v560
    %v566 = vsel %vm565, %v560, %v564
    %v567 = vmul.f32 %v556, %v566
    %v568 = vmul.f32 %v559, %v566
    %v569 = vmul.f32 %v550, %v550
    %v570 = vmul.f32 %v551, %v551
    %v571 = vsel %vm28, %v569, 0.0
    %572 = vadd.xlane.f32.xlu0 %v571
    %v573 = vpop.xlane.xlu0 %572
    %v574 = vsel %vm28, %v570, 0.0
    %575 = vadd.xlane.f32.xlu0 %v574
    %v576 = vpop.xlane.xlu0 %575
    %v577 = vmul.f32 %v573, %v566
    %v578 = vmul.f32 %v576, %v566
    %v579 = vmul.f32 %v567, %v567
    %v580 = vmul.f32 %v568, %v568
    %v581 = vsub.f32 %v577, %v579
    %v582 = vsub.f32 %v578, %v580
    %v583 = vsub.f32 %v550, %v567
    %v584 = vsub.f32 %v551, %v568
    %v585 = vadd.f32 %v581, 1e-05
    %v586 = vadd.f32 %v582, 1e-05
    %v587 = vrsqrt.pop %v585
    %v588 = vmul.f32 %v587, %v585
    %v589 = vmul.f32 %v588, %v587
    %v590 = vmul.f32 0.5, %v589
    %v591 = vsub.f32 1.5, %v590
    %v592 = vmul.f32 %v587, %v591
    %vm593 = vweird.f32 %v585
    %vm594 = vweird.f32 %v587
    %vm595 = vmor %vm593, %vm594
    %v596 = vsel %vm595, %v587, %v592
    %v597 = vrsqrt.pop %v586
    %v598 = vmul.f32 %v597, %v586
    %v599 = vmul.f32 %v598, %v597
    %v600 = vmul.f32 0.5, %v599
    %v601 = vsub.f32 1.5, %v600
    %v602 = vmul.f32 %v597, %v601
    %vm603 = vweird.f32 %v586
    %vm604 = vweird.f32 %v597
    %vm605 = vmor %vm603, %vm604
    %v606 = vsel %vm605, %v597, %v602
    %v607 = vmul.f32 %v583, %v596
    %v608 = vmul.f32 %v584, %v606
    %v610 = vperm.slane %v552, 0
    %611 = vrot.lane.b32.xlu0 %v610, 32
    %v612 = vpop.permute.xlu0 %611
    %v614 = vmul.f32 %v607, %v612
    %v615 = vmul.f32 %v608, %v612
    %v617 = vperm.slane %v553, 0
    %v619 = vadd.f32 %v614, %v617
    %v620 = vadd.f32 %v615, %v617
    %v621 = vld [vmem:[%s1 + $0x8] sm:$0xff]
    %v622 = vld [vmem:[%s1 + $0x20] sm:$0xff]
    %v623 = vld [vmem:[%s1 + $0x38] sm:$0xff]
    %v624 = vld [vmem:[%s1 + $0x50] sm:$0xff]
    %v625 = vld [vmem:[%s3 + $0x1] sm:$0x1]
    %v627 = vperm.slane %v625, 0
    %v630 = vsel %vm28, %v619, 0
    %v633 = vsel %vm28, %v620, 0
    %635 = vmatpush.msra.mxu0 0.0
    %636 = vmatpush.msra.mxu0 0.0
    %637 = vmatpush.msra.mxu0 0.0
    %638 = vmatpush.msra.mxu0 0.0
    %639 = vmatpush.msra.mxu0 0.0
    %640 = vmatpush.msra.mxu0 0.0
    %641 = vmatpush.msra.mxu0 0.0
    %642 = vmatpush.msra.mxu0 0.0
    %643 = vmatpush.msra.mxu0 0.0
    %644 = vmatpush.msra.mxu0 0.0
    %645 = vmatpush.msra.mxu0 0.0
    %646 = vmatpush.msra.mxu0 0.0
    %647 = vmatpush.msra.mxu0 %v624
    %648 = vmatpush.msra.mxu0 %v623
    %649 = vmatpush.msra.mxu0 %v622
    %650 = vmatpush.msra.mxu0 %v621
    %651 = vmatmul.f32.gmra.mxu0 %v630
    %v652 = vpop.f32.mrf.mxu0
    %v653 = vadd.f32 %v627, %v652
    %654 = vmatmul.f32.gmra.mxu0 %v633
    %v655 = vpop.f32.mrf.mxu0
    %v656 = vadd.f32 %v627, %v655
    %657 = vdwg.mxu0
    %658 = vrot.lane.b32.xlu0 %v18, 96
    %v659 = vpop.permute.xlu0 %658
    %660 = vrot.lane.b32.xlu0 %v19, 96
    %v661 = vpop.permute.xlu0 %660
    %666 = vrot.lane.b32.xlu0 %v621, 96
    %v667 = vpop.permute.xlu0 %666
    %668 = vrot.lane.b32.xlu0 %v622, 96
    %v669 = vpop.permute.xlu0 %668
    %670 = vrot.lane.b32.xlu0 %v623, 96
    %v671 = vpop.permute.xlu0 %670
    %672 = vrot.lane.b32.xlu0 %v624, 96
    %v673 = vpop.permute.xlu0 %672
    %678 = vrot.lane.b32.xlu0 %v627, 96
    %v679 = vpop.permute.xlu0 %678
    %v681 = vsel %vm28, %v659, 0
    %v683 = vsel %vm28, %v661, 0
    %685 = vmatpush.msra.mxu0 0.0
    %686 = vmatpush.msra.mxu0 0.0
    %687 = vmatpush.msra.mxu0 0.0
    %688 = vmatpush.msra.mxu0 0.0
    %689 = vmatpush.msra.mxu0 0.0
    %690 = vmatpush.msra.mxu0 0.0
    %691 = vmatpush.msra.mxu0 0.0
    %692 = vmatpush.msra.mxu0 0.0
    %693 = vmatpush.msra.mxu0 0.0
    %694 = vmatpush.msra.mxu0 0.0
    %695 = vmatpush.msra.mxu0 0.0
    %696 = vmatpush.msra.mxu0 0.0
    %697 = vmatpush.msra.mxu0 %v673
    %698 = vmatpush.msra.mxu0 %v671
    %699 = vmatpush.msra.mxu0 %v669
    %700 = vmatpush.msra.mxu0 %v667
    %701 = vmatmul.f32.gmra.mxu0 %v681
    %v702 = vpop.f32.mrf.mxu0
    %v703 = vadd.f32 %v679, %v702
    %704 = vmatmul.f32.gmra.mxu0 %v683
    %v705 = vpop.f32.mrf.mxu0
    %v706 = vadd.f32 %v679, %v705
    %707 = vdwg.mxu0
    %710 = vrot.lane.b32.xlu0 %v653, 120
    %v711 = vpop.permute.xlu0 %710
    %712 = vrot.lane.b32.xlu0 %v656, 120
    %v713 = vpop.permute.xlu0 %712
    %714 = vrot.lane.b32.xlu0 %v653, 112
    %v715 = vpop.permute.xlu0 %714
    %716 = vrot.lane.b32.xlu0 %v656, 112
    %v717 = vpop.permute.xlu0 %716
    %718 = vrot.lane.b32.xlu0 %v653, 104
    %v719 = vpop.permute.xlu0 %718
    %720 = vrot.lane.b32.xlu0 %v656, 104
    %v721 = vpop.permute.xlu0 %720
    %724 = vrot.lane.b32.xlu0 %v703, 120
    %v725 = vpop.permute.xlu0 %724
    %726 = vrot.lane.b32.xlu0 %v706, 120
    %v727 = vpop.permute.xlu0 %726
    %728 = vrot.lane.b32.xlu0 %v703, 112
    %v729 = vpop.permute.xlu0 %728
    %730 = vrot.lane.b32.xlu0 %v706, 112
    %v731 = vpop.permute.xlu0 %730
    %732 = vrot.lane.b32.xlu0 %v703, 104
    %v733 = vpop.permute.xlu0 %732
    %734 = vrot.lane.b32.xlu0 %v706, 104
    %v735 = vpop.permute.xlu0 %734
    %v736 = vsel %vm76, %v653, 0
    %v738 = vsel %vm76, %v656, 0
    %v740 = vsel %vm76, %v703, 0
    %v742 = vsel %vm76, %v706, 0
    %744 = vmatpush.xpose.msra.mxu0 0.0
    %745 = vmatpush.xpose.msra.mxu0 0.0
    %746 = vmatpush.xpose.msra.mxu0 0.0
    %747 = vmatpush.xpose.msra.mxu0 0.0
    %748 = vmatpush.xpose.msra.mxu0 0.0
    %749 = vmatpush.xpose.msra.mxu0 0.0
    %750 = vmatpush.xpose.msra.mxu0 0.0
    %751 = vmatpush.xpose.msra.mxu0 0.0
    %752 = vmatpush.xpose.msra.mxu0 0.0
    %753 = vmatpush.xpose.msra.mxu0 0.0
    %754 = vmatpush.xpose.msra.mxu0 0.0
    %755 = vmatpush.xpose.msra.mxu0 0.0
    %756 = vmatpush.xpose.msra.mxu0 0.0
    %757 = vmatpush.xpose.msra.mxu0 0.0
    %758 = vmatpush.xpose.msra.mxu0 %v742
    %759 = vmatpush.xpose.msra.mxu0 %v740
    %760 = vmatmul.f32.gmra.mxu0 %v736
    %v761 = vpop.f32.mrf.mxu0
    %v762 = vadd.f32 0.0, %v761
    %763 = vmatmul.f32.gmra.mxu0 %v738
    %v764 = vpop.f32.mrf.mxu0
    %v765 = vadd.f32 0.0, %v764
    %766 = vdwg.mxu0
    %v767 = vsel %vm76, %v711, 0
    %v769 = vsel %vm76, %v713, 0
    %v771 = vsel %vm76, %v725, 0
    %v773 = vsel %vm76, %v727, 0
    %775 = vmatpush.xpose.msra.mxu0 0.0
    %776 = vmatpush.xpose.msra.mxu0 0.0
    %777 = vmatpush.xpose.msra.mxu0 0.0
    %778 = vmatpush.xpose.msra.mxu0 0.0
    %779 = vmatpush.xpose.msra.mxu0 0.0
    %780 = vmatpush.xpose.msra.mxu0 0.0
    %781 = vmatpush.xpose.msra.mxu0 0.0
    %782 = vmatpush.xpose.msra.mxu0 0.0
    %783 = vmatpush.xpose.msra.mxu0 0.0
    %784 = vmatpush.xpose.msra.mxu0 0.0
    %785 = vmatpush.xpose.msra.mxu0 0.0
    %786 = vmatpush.xpose.msra.mxu0 0.0
    %787 = vmatpush.xpose.msra.mxu0 0.0
    %788 = vmatpush.xpose.msra.mxu0 0.0
    %789 = vmatpush.xpose.msra.mxu0 %v773
    %790 = vmatpush.xpose.msra.mxu0 %v771
    %791 = vmatmul.f32.gmra.mxu0 %v767
    %v792 = vpop.f32.mrf.mxu0
    %v793 = vadd.f32 0.0, %v792
    %794 = vmatmul.f32.gmra.mxu0 %v769
    %v795 = vpop.f32.mrf.mxu0
    %v796 = vadd.f32 0.0, %v795
    %797 = vdwg.mxu0
    %v798 = vsel %vm76, %v715, 0
    %v800 = vsel %vm76, %v717, 0
    %v802 = vsel %vm76, %v729, 0
    %v804 = vsel %vm76, %v731, 0
    %806 = vmatpush.xpose.msra.mxu0 0.0
    %807 = vmatpush.xpose.msra.mxu0 0.0
    %808 = vmatpush.xpose.msra.mxu0 0.0
    %809 = vmatpush.xpose.msra.mxu0 0.0
    %810 = vmatpush.xpose.msra.mxu0 0.0
    %811 = vmatpush.xpose.msra.mxu0 0.0
    %812 = vmatpush.xpose.msra.mxu0 0.0
    %813 = vmatpush.xpose.msra.mxu0 0.0
    %814 = vmatpush.xpose.msra.mxu0 0.0
    %815 = vmatpush.xpose.msra.mxu0 0.0
    %816 = vmatpush.xpose.msra.mxu0 0.0
    %817 = vmatpush.xpose.msra.mxu0 0.0
    %818 = vmatpush.xpose.msra.mxu0 0.0
    %819 = vmatpush.xpose.msra.mxu0 0.0
    %820 = vmatpush.xpose.msra.mxu0 %v804
    %821 = vmatpush.xpose.msra.mxu0 %v802
    %822 = vmatmul.f32.gmra.mxu0 %v798
    %v823 = vpop.f32.mrf.mxu0
    %v824 = vadd.f32 0.0, %v823
    %825 = vmatmul.f32.gmra.mxu0 %v800
    %v826 = vpop.f32.mrf.mxu0
    %v827 = vadd.f32 0.0, %v826
    %828 = vdwg.mxu0
    %v829 = vsel %vm76, %v719, 0
    %v831 = vsel %vm76, %v721, 0
    %v833 = vsel %vm76, %v733, 0
    %v835 = vsel %vm76, %v735, 0
    %837 = vmatpush.xpose.msra.mxu0 0.0
    %838 = vmatpush.xpose.msra.mxu0 0.0
    %839 = vmatpush.xpose.msra.mxu0 0.0
    %840 = vmatpush.xpose.msra.mxu0 0.0
    %841 = vmatpush.xpose.msra.mxu0 0.0
    %842 = vmatpush.xpose.msra.mxu0 0.0
    %843 = vmatpush.xpose.msra.mxu0 0.0
    %844 = vmatpush.xpose.msra.mxu0 0.0
    %845 = vmatpush.xpose.msra.mxu0 0.0
    %846 = vmatpush.xpose.msra.mxu0 0.0
    %847 = vmatpush.xpose.msra.mxu0 0.0
    %848 = vmatpush.xpose.msra.mxu0 0.0
    %849 = vmatpush.xpose.msra.mxu0 0.0
    %850 = vmatpush.xpose.msra.mxu0 0.0
    %851 = vmatpush.xpose.msra.mxu0 %v835
    %852 = vmatpush.xpose.msra.mxu0 %v833
    %853 = vmatmul.f32.gmra.mxu0 %v829
    %v854 = vpop.f32.mrf.mxu0
    %v855 = vadd.f32 0.0, %v854
    %856 = vmatmul.f32.gmra.mxu0 %v831
    %v857 = vpop.f32.mrf.mxu0
    %v858 = vadd.f32 0.0, %v857
    %859 = vdwg.mxu0
    %v860 = vmul.f32 %v762, 0.35355338
    %v861 = vmul.f32 %v765, 0.35355338
    %v862 = vmul.f32 %v793, 0.35355338
    %v863 = vmul.f32 %v796, 0.35355338
    %v864 = vmul.f32 %v824, 0.35355338
    %v865 = vmul.f32 %v827, 0.35355338
    %v866 = vmul.f32 %v855, 0.35355338
    %v867 = vmul.f32 %v858, 0.35355338
    %868 = vrot.lane.b32.xlu0 %v18, 48
    %v869 = vpop.permute.xlu0 %868
    %870 = vrot.lane.b32.xlu0 %v19, 48
    %v871 = vpop.permute.xlu0 %870
    %v874 = vadd.f32 %v860, %v869
    %v875 = vadd.f32 %v861, %v871
    %v876 = vadd.f32 %v862, %v869
    %v877 = vadd.f32 %v863, %v871
    %v878 = vadd.f32 %v864, %v869
    %v879 = vadd.f32 %v865, %v871
    %v880 = vadd.f32 %v866, %v869
    %v881 = vadd.f32 %v867, %v871
    %v882 = vsel %vm235, %v874, -inf
    %883 = vmax.xlane.f32.xlu0 %v882
    %v884 = vpop.xlane.xlu0 %883
    %v885 = vsel %vm235, %v875, -inf
    %886 = vmax.xlane.f32.xlu0 %v885
    %v887 = vpop.xlane.xlu0 %886
    %v888 = vsel %vm235, %v876, -inf
    %889 = vmax.xlane.f32.xlu0 %v888
    %v890 = vpop.xlane.xlu0 %889
    %v891 = vsel %vm235, %v877, -inf
    %892 = vmax.xlane.f32.xlu0 %v891
    %v893 = vpop.xlane.xlu0 %892
    %v894 = vsel %vm235, %v878, -inf
    %895 = vmax.xlane.f32.xlu0 %v894
    %v896 = vpop.xlane.xlu0 %895
    %v897 = vsel %vm235, %v879, -inf
    %898 = vmax.xlane.f32.xlu0 %v897
    %v899 = vpop.xlane.xlu0 %898
    %v900 = vsel %vm235, %v880, -inf
    %901 = vmax.xlane.f32.xlu0 %v900
    %v902 = vpop.xlane.xlu0 %901
    %v903 = vsel %vm235, %v881, -inf
    %904 = vmax.xlane.f32.xlu0 %v903
    %v905 = vpop.xlane.xlu0 %904
    %v906 = vsub.f32 %v874, %v884
    %v907 = vsub.f32 %v875, %v887
    %v908 = vsub.f32 %v876, %v890
    %v909 = vsub.f32 %v877, %v893
    %v910 = vsub.f32 %v878, %v896
    %v911 = vsub.f32 %v879, %v899
    %v912 = vsub.f32 %v880, %v902
    %v913 = vsub.f32 %v881, %v905
    %v914 = vmul.f32 %v906, 1.442695
    %v915 = vpow.pop %v914
    %v916 = vmul.f32 %v907, 1.442695
    %v917 = vpow.pop %v916
    %v918 = vmul.f32 %v908, 1.442695
    %v919 = vpow.pop %v918
    %v920 = vmul.f32 %v909, 1.442695
    %v921 = vpow.pop %v920
    %v922 = vmul.f32 %v910, 1.442695
    %v923 = vpow.pop %v922
    %v924 = vmul.f32 %v911, 1.442695
    %v925 = vpow.pop %v924
    %v926 = vmul.f32 %v912, 1.442695
    %v927 = vpow.pop %v926
    %v928 = vmul.f32 %v913, 1.442695
    %v929 = vpow.pop %v928
    %v930 = vsel %vm235, %v915, 0.0
    %931 = vadd.xlane.f32.xlu0 %v930
    %v932 = vpop.xlane.xlu0 %931
    %v933 = vsel %vm235, %v917, 0.0
    %934 = vadd.xlane.f32.xlu0 %v933
    %v935 = vpop.xlane.xlu0 %934
    %v936 = vsel %vm235, %v919, 0.0
    %937 = vadd.xlane.f32.xlu0 %v936
    %v938 = vpop.xlane.xlu0 %937
    %v939 = vsel %vm235, %v921, 0.0
    %940 = vadd.xlane.f32.xlu0 %v939
    %v941 = vpop.xlane.xlu0 %940
    %v942 = vsel %vm235, %v923, 0.0
    %943 = vadd.xlane.f32.xlu0 %v942
    %v944 = vpop.xlane.xlu0 %943
    %v945 = vsel %vm235, %v925, 0.0
    %946 = vadd.xlane.f32.xlu0 %v945
    %v947 = vpop.xlane.xlu0 %946
    %v948 = vsel %vm235, %v927, 0.0
    %949 = vadd.xlane.f32.xlu0 %v948
    %v950 = vpop.xlane.xlu0 %949
    %v951 = vsel %vm235, %v929, 0.0
    %952 = vadd.xlane.f32.xlu0 %v951
    %v953 = vpop.xlane.xlu0 %952
    %v954 = vrcp.pop %v932
    %v955 = vrcp.pop %v935
    %v956 = vrcp.pop %v938
    %v957 = vrcp.pop %v941
    %v958 = vrcp.pop %v944
    %v959 = vrcp.pop %v947
    %v960 = vrcp.pop %v950
    %v961 = vrcp.pop %v953
    %v962 = vmul.f32 %v915, %v954
    %v963 = vmul.f32 %v917, %v955
    %v964 = vmul.f32 %v919, %v956
    %v965 = vmul.f32 %v921, %v957
    %v966 = vmul.f32 %v923, %v958
    %v967 = vmul.f32 %v925, %v959
    %v968 = vmul.f32 %v927, %v960
    %v969 = vmul.f32 %v929, %v961
    %970 = vrot.lane.b32.xlu0 %v703, 96
    %v971 = vpop.permute.xlu0 %970
    %972 = vrot.lane.b32.xlu0 %v706, 96
    %v973 = vpop.permute.xlu0 %972
    %v977 = vsel %vm235, %v962, 0
    %v980 = vsel %vm235, %v963, 0
    %982 = vmatpush.msra.mxu0 0.0
    %983 = vmatpush.msra.mxu0 0.0
    %984 = vmatpush.msra.mxu0 0.0
    %985 = vmatpush.msra.mxu0 0.0
    %986 = vmatpush.msra.mxu0 0.0
    %987 = vmatpush.msra.mxu0 0.0
    %988 = vmatpush.msra.mxu0 0.0
    %989 = vmatpush.msra.mxu0 0.0
    %990 = vmatpush.msra.mxu0 0.0
    %991 = vmatpush.msra.mxu0 0.0
    %992 = vmatpush.msra.mxu0 0.0
    %993 = vmatpush.msra.mxu0 0.0
    %994 = vmatpush.msra.mxu0 0.0
    %995 = vmatpush.msra.mxu0 0.0
    %996 = vmatpush.msra.mxu0 %v973
    %997 = vmatpush.msra.mxu0 %v971
    %998 = vmatmul.f32.gmra.mxu0 %v977
    %v999 = vpop.f32.mrf.mxu0
    %v1000 = vadd.f32 0.0, %v999
    %1001 = vmatmul.f32.gmra.mxu0 %v980
    %v1002 = vpop.f32.mrf.mxu0
    %v1003 = vadd.f32 0.0, %v1002
    %1004 = vdwg.mxu0
    %1005 = vrot.lane.b32.xlu0 %v725, 96
    %v1006 = vpop.permute.xlu0 %1005
    %1007 = vrot.lane.b32.xlu0 %v727, 96
    %v1008 = vpop.permute.xlu0 %1007
    %v1012 = vsel %vm235, %v964, 0
    %v1015 = vsel %vm235, %v965, 0
    %1017 = vmatpush.msra.mxu0 0.0
    %1018 = vmatpush.msra.mxu0 0.0
    %1019 = vmatpush.msra.mxu0 0.0
    %1020 = vmatpush.msra.mxu0 0.0
    %1021 = vmatpush.msra.mxu0 0.0
    %1022 = vmatpush.msra.mxu0 0.0
    %1023 = vmatpush.msra.mxu0 0.0
    %1024 = vmatpush.msra.mxu0 0.0
    %1025 = vmatpush.msra.mxu0 0.0
    %1026 = vmatpush.msra.mxu0 0.0
    %1027 = vmatpush.msra.mxu0 0.0
    %1028 = vmatpush.msra.mxu0 0.0
    %1029 = vmatpush.msra.mxu0 0.0
    %1030 = vmatpush.msra.mxu0 0.0
    %1031 = vmatpush.msra.mxu0 %v1008
    %1032 = vmatpush.msra.mxu0 %v1006
    %1033 = vmatmul.f32.gmra.mxu0 %v1012
    %v1034 = vpop.f32.mrf.mxu0
    %v1035 = vadd.f32 0.0, %v1034
    %1036 = vmatmul.f32.gmra.mxu0 %v1015
    %v1037 = vpop.f32.mrf.mxu0
    %v1038 = vadd.f32 0.0, %v1037
    %1039 = vdwg.mxu0
    %1040 = vrot.lane.b32.xlu0 %v729, 96
    %v1041 = vpop.permute.xlu0 %1040
    %1042 = vrot.lane.b32.xlu0 %v731, 96
    %v1043 = vpop.permute.xlu0 %1042
    %v1047 = vsel %vm235, %v966, 0
    %v1050 = vsel %vm235, %v967, 0
    %1052 = vmatpush.msra.mxu0 0.0
    %1053 = vmatpush.msra.mxu0 0.0
    %1054 = vmatpush.msra.mxu0 0.0
    %1055 = vmatpush.msra.mxu0 0.0
    %1056 = vmatpush.msra.mxu0 0.0
    %1057 = vmatpush.msra.mxu0 0.0
    %1058 = vmatpush.msra.mxu0 0.0
    %1059 = vmatpush.msra.mxu0 0.0
    %1060 = vmatpush.msra.mxu0 0.0
    %1061 = vmatpush.msra.mxu0 0.0
    %1062 = vmatpush.msra.mxu0 0.0
    %1063 = vmatpush.msra.mxu0 0.0
    %1064 = vmatpush.msra.mxu0 0.0
    %1065 = vmatpush.msra.mxu0 0.0
    %1066 = vmatpush.msra.mxu0 %v1043
    %1067 = vmatpush.msra.mxu0 %v1041
    %1068 = vmatmul.f32.gmra.mxu0 %v1047
    %v1069 = vpop.f32.mrf.mxu0
    %v1070 = vadd.f32 0.0, %v1069
    %1071 = vmatmul.f32.gmra.mxu0 %v1050
    %v1072 = vpop.f32.mrf.mxu0
    %v1073 = vadd.f32 0.0, %v1072
    %1074 = vdwg.mxu0
    %1075 = vrot.lane.b32.xlu0 %v733, 96
    %v1076 = vpop.permute.xlu0 %1075
    %1077 = vrot.lane.b32.xlu0 %v735, 96
    %v1078 = vpop.permute.xlu0 %1077
    %v1082 = vsel %vm235, %v968, 0
    %v1085 = vsel %vm235, %v969, 0
    %1087 = vmatpush.msra.mxu0 0.0
    %1088 = vmatpush.msra.mxu0 0.0
    %1089 = vmatpush.msra.mxu0 0.0
    %1090 = vmatpush.msra.mxu0 0.0
    %1091 = vmatpush.msra.mxu0 0.0
    %1092 = vmatpush.msra.mxu0 0.0
    %1093 = vmatpush.msra.mxu0 0.0
    %1094 = vmatpush.msra.mxu0 0.0
    %1095 = vmatpush.msra.mxu0 0.0
    %1096 = vmatpush.msra.mxu0 0.0
    %1097 = vmatpush.msra.mxu0 0.0
    %1098 = vmatpush.msra.mxu0 0.0
    %1099 = vmatpush.msra.mxu0 0.0
    %1100 = vmatpush.msra.mxu0 0.0
    %1101 = vmatpush.msra.mxu0 %v1078
    %1102 = vmatpush.msra.mxu0 %v1076
    %1103 = vmatmul.f32.gmra.mxu0 %v1082
    %v1104 = vpop.f32.mrf.mxu0
    %v1105 = vadd.f32 0.0, %v1104
    %1106 = vmatmul.f32.gmra.mxu0 %v1085
    %v1107 = vpop.f32.mrf.mxu0
    %v1108 = vadd.f32 0.0, %v1107
    %1109 = vdwg.mxu0
    %1112 = vrot.lane.b32.xlu0 %v1035, 8
    %v1113 = vpop.permute.xlu0 %1112
    %1114 = vrot.lane.b32.xlu0 %v1038, 8
    %v1115 = vpop.permute.xlu0 %1114
    %1120 = vrot.lane.b32.xlu0 %v1070, 16
    %v1121 = vpop.permute.xlu0 %1120
    %1122 = vrot.lane.b32.xlu0 %v1073, 16
    %v1123 = vpop.permute.xlu0 %1122
    %1128 = vrot.lane.b32.xlu0 %v1105, 24
    %v1129 = vpop.permute.xlu0 %1128
    %1130 = vrot.lane.b32.xlu0 %v1108, 24
    %v1131 = vpop.permute.xlu0 %1130
    %v1134 = vsel %vm76, %v1000, %v1113
    %v1135 = vsel %vm76, %v1003, %v1115
    %v1136 = vsel %vm235, %v1134, %v1121
    %v1137 = vsel %vm235, %v1135, %v1123
    %v1138 = vsel %vm492, %v1136, %v1129
    %v1139 = vsel %vm492, %v1137, %v1131
    %v1140 = vld [vmem:[%s1 + $0x8] sm:$0xff]
    %v1141 = vld [vmem:[%s1 + $0x20] sm:$0xff]
    %v1142 = vld [vmem:[%s1 + $0x38] sm:$0xff]
    %v1143 = vld [vmem:[%s1 + $0x50] sm:$0xff]
    %v1144 = vld [vmem:[%s3 + $0x1] sm:$0x1]
    %v1146 = vperm.slane %v1144, 0
    %1151 = vrot.lane.b32.xlu0 %v1140, 32
    %v1152 = vpop.permute.xlu0 %1151
    %1153 = vrot.lane.b32.xlu0 %v1141, 32
    %v1154 = vpop.permute.xlu0 %1153
    %1155 = vrot.lane.b32.xlu0 %v1142, 32
    %v1156 = vpop.permute.xlu0 %1155
    %1157 = vrot.lane.b32.xlu0 %v1143, 32
    %v1158 = vpop.permute.xlu0 %1157
    %1163 = vrot.lane.b32.xlu0 %v1146, 32
    %v1164 = vpop.permute.xlu0 %1163
    %v1167 = vsel %vm28, %v1138, 0
    %v1170 = vsel %vm28, %v1139, 0
    %1172 = vmatpush.msra.mxu0 0.0
    %1173 = vmatpush.msra.mxu0 0.0
    %1174 = vmatpush.msra.mxu0 0.0
    %1175 = vmatpush.msra.mxu0 0.0
    %1176 = vmatpush.msra.mxu0 0.0
    %1177 = vmatpush.msra.mxu0 0.0
    %1178 = vmatpush.msra.mxu0 0.0
    %1179 = vmatpush.msra.mxu0 0.0
    %1180 = vmatpush.msra.mxu0 0.0
    %1181 = vmatpush.msra.mxu0 0.0
    %1182 = vmatpush.msra.mxu0 0.0
    %1183 = vmatpush.msra.mxu0 0.0
    %1184 = vmatpush.msra.mxu0 %v1158
    %1185 = vmatpush.msra.mxu0 %v1156
    %1186 = vmatpush.msra.mxu0 %v1154
    %1187 = vmatpush.msra.mxu0 %v1152
    %1188 = vmatmul.f32.gmra.mxu0 %v1167
    %v1189 = vpop.f32.mrf.mxu0
    %v1190 = vadd.f32 %v1164, %v1189
    %1191 = vmatmul.f32.gmra.mxu0 %v1170
    %v1192 = vpop.f32.mrf.mxu0
    %v1193 = vadd.f32 %v1164, %v1192
    %1194 = vdwg.mxu0
    %v1195 = vadd.f32 %v619, %v1190
    %v1196 = vadd.f32 %v620, %v1193
    %v1197 = vld [vmem:[%s3 + $0x3] sm:$0x1]
    %v1198 = vsel %vm28, %v1195, 0.0
    %1199 = vadd.xlane.f32.xlu0 %v1198
    %v1200 = vpop.xlane.xlu0 %1199
    %v1201 = vsel %vm28, %v1196, 0.0
    %1202 = vadd.xlane.f32.xlu0 %v1201
    %v1203 = vpop.xlane.xlu0 %1202
    %v1204 = vmul.f32 %v1200, %v566
    %v1205 = vmul.f32 %v1203, %v566
    %v1206 = vmul.f32 %v1195, %v1195
    %v1207 = vmul.f32 %v1196, %v1196
    %v1208 = vsel %vm28, %v1206, 0.0
    %1209 = vadd.xlane.f32.xlu0 %v1208
    %v1210 = vpop.xlane.xlu0 %1209
    %v1211 = vsel %vm28, %v1207, 0.0
    %1212 = vadd.xlane.f32.xlu0 %v1211
    %v1213 = vpop.xlane.xlu0 %1212
    %v1214 = vmul.f32 %v1210, %v566
    %v1215 = vmul.f32 %v1213, %v566
    %v1216 = vmul.f32 %v1204, %v1204
    %v1217 = vmul.f32 %v1205, %v1205
    %v1218 = vsub.f32 %v1214, %v1216
    %v1219 = vsub.f32 %v1215, %v1217
    %v1220 = vsub.f32 %v1195, %v1204
    %v1221 = vsub.f32 %v1196, %v1205
    %v1222 = vadd.f32 %v1218, 1e-05
    %v1223 = vadd.f32 %v1219, 1e-05
    %v1224 = vrsqrt.pop %v1222
    %v1225 = vmul.f32 %v1224, %v1222
    %v1226 = vmul.f32 %v1225, %v1224
    %v1227 = vmul.f32 0.5, %v1226
    %v1228 = vsub.f32 1.5, %v1227
    %v1229 = vmul.f32 %v1224, %v1228
    %vm1230 = vweird.f32 %v1222
    %vm1231 = vweird.f32 %v1224
    %vm1232 = vmor %vm1230, %vm1231
    %v1233 = vsel %vm1232, %v1224, %v1229
    %v1234 = vrsqrt.pop %v1223
    %v1235 = vmul.f32 %v1234, %v1223
    %v1236 = vmul.f32 %v1235, %v1234
    %v1237 = vmul.f32 0.5, %v1236
    %v1238 = vsub.f32 1.5, %v1237
    %v1239 = vmul.f32 %v1234, %v1238
    %vm1240 = vweird.f32 %v1223
    %vm1241 = vweird.f32 %v1234
    %vm1242 = vmor %vm1240, %vm1241
    %v1243 = vsel %vm1242, %v1234, %v1239
    %v1244 = vmul.f32 %v1220, %v1233
    %v1245 = vmul.f32 %v1221, %v1243
    %v1247 = vperm.slane %v1197, 0
    %1248 = vrot.lane.b32.xlu0 %v1247, 96
    %v1249 = vpop.permute.xlu0 %1248
    %v1251 = vmul.f32 %v1244, %v1249
    %v1252 = vmul.f32 %v1245, %v1249
    %1253 = vrot.lane.b32.xlu0 %v1247, 64
    %v1254 = vpop.permute.xlu0 %1253
    %v1256 = vadd.f32 %v1251, %v1254
    %v1257 = vadd.f32 %v1252, %v1254
    %v1258 = vld [vmem:[%s1 + $0x10] sm:$0xff]
    %v1259 = vld [vmem:[%s1 + $0x28] sm:$0xff]
    %v1260 = vld [vmem:[%s1 + $0x40] sm:$0xff]
    %v1261 = vld [vmem:[%s1 + $0x58] sm:$0xff]
    %v1262 = vld [vmem:[%s3 + $0x2] sm:$0x1]
    %v1264 = vperm.slane %v1262, 0
    %v1267 = vsel %vm28, %v1256, 0
    %v1270 = vsel %vm28, %v1257, 0
    %1272 = vmatpush.msra.mxu0 0.0
    %1273 = vmatpush.msra.mxu0 0.0
    %1274 = vmatpush.msra.mxu0 0.0
    %1275 = vmatpush.msra.mxu0 0.0
    %1276 = vmatpush.msra.mxu0 0.0
    %1277 = vmatpush.msra.mxu0 0.0
    %1278 = vmatpush.msra.mxu0 0.0
    %1279 = vmatpush.msra.mxu0 0.0
    %1280 = vmatpush.msra.mxu0 0.0
    %1281 = vmatpush.msra.mxu0 0.0
    %1282 = vmatpush.msra.mxu0 0.0
    %1283 = vmatpush.msra.mxu0 0.0
    %1284 = vmatpush.msra.mxu0 %v1261
    %1285 = vmatpush.msra.mxu0 %v1260
    %1286 = vmatpush.msra.mxu0 %v1259
    %1287 = vmatpush.msra.mxu0 %v1258
    %1288 = vmatmul.f32.gmra.mxu0 %v1267
    %v1289 = vpop.f32.mrf.mxu0
    %v1290 = vadd.f32 %v1264, %v1289
    %1291 = vmatmul.f32.gmra.mxu0 %v1270
    %v1292 = vpop.f32.mrf.mxu0
    %v1293 = vadd.f32 %v1264, %v1292
    %1294 = vdwg.mxu0
    %v1295 = vmax.f32 %v1290, 0.0
    %v1296 = vmax.f32 %v1293, 0.0
    %v1297 = vld [vmem:[%s2] sm:$0xff]
    %v1298 = vld [vmem:[%s2 + $0x8] sm:$0xff]
    %v1299 = vld [vmem:[%s2 + $0x10] sm:$0xff]
    %v1300 = vld [vmem:[%s2 + $0x18] sm:$0xff]
    %v1301 = vld [vmem:[%s2 + $0x20] sm:$0xff]
    %v1302 = vld [vmem:[%s2 + $0x28] sm:$0xff]
    %v1303 = vld [vmem:[%s2 + $0x30] sm:$0xff]
    %v1304 = vld [vmem:[%s2 + $0x38] sm:$0xff]
    %1305 = vrot.lane.b32.xlu0 %v1264, 64
    %v1306 = vpop.permute.xlu0 %1305
    %vm1308 = vcmask 523264
    %v1310 = vsel %vm1308, %v1295, 0
    %v1313 = vsel %vm1308, %v1296, 0
    %1315 = vmatpush.msra.mxu0 0.0
    %1316 = vmatpush.msra.mxu0 0.0
    %1317 = vmatpush.msra.mxu0 0.0
    %1318 = vmatpush.msra.mxu0 0.0
    %1319 = vmatpush.msra.mxu0 0.0
    %1320 = vmatpush.msra.mxu0 0.0
    %1321 = vmatpush.msra.mxu0 0.0
    %1322 = vmatpush.msra.mxu0 0.0
    %1323 = vmatpush.msra.mxu0 %v1304
    %1324 = vmatpush.msra.mxu0 %v1303
    %1325 = vmatpush.msra.mxu0 %v1302
    %1326 = vmatpush.msra.mxu0 %v1301
    %1327 = vmatpush.msra.mxu0 %v1300
    %1328 = vmatpush.msra.mxu0 %v1299
    %1329 = vmatpush.msra.mxu0 %v1298
    %1330 = vmatpush.msra.mxu0 %v1297
    %1331 = vmatmul.f32.gmra.mxu0 %v1310
    %v1332 = vpop.f32.mrf.mxu0
    %v1333 = vadd.f32 %v1306, %v1332
    %1334 = vmatmul.f32.gmra.mxu0 %v1313
    %v1335 = vpop.f32.mrf.mxu0
    %v1336 = vadd.f32 %v1306, %v1335
    %1337 = vdwg.mxu0
    %v1338 = vadd.f32 %v1256, %v1333
    %v1339 = vadd.f32 %v1257, %v1336
    %v1340 = vld [vmem:[%s3 + $0x4] sm:$0x1]
    %v1341 = vsel %vm28, %v1338, 0.0
    %1342 = vadd.xlane.f32.xlu0 %v1341
    %v1343 = vpop.xlane.xlu0 %1342
    %v1344 = vsel %vm28, %v1339, 0.0
    %1345 = vadd.xlane.f32.xlu0 %v1344
    %v1346 = vpop.xlane.xlu0 %1345
    %v1347 = vmul.f32 %v1343, %v566
    %v1348 = vmul.f32 %v1346, %v566
    %v1349 = vmul.f32 %v1338, %v1338
    %v1350 = vmul.f32 %v1339, %v1339
    %v1351 = vsel %vm28, %v1349, 0.0
    %1352 = vadd.xlane.f32.xlu0 %v1351
    %v1353 = vpop.xlane.xlu0 %1352
    %v1354 = vsel %vm28, %v1350, 0.0
    %1355 = vadd.xlane.f32.xlu0 %v1354
    %v1356 = vpop.xlane.xlu0 %1355
    %v1357 = vmul.f32 %v1353, %v566
    %v1358 = vmul.f32 %v1356, %v566
    %v1359 = vmul.f32 %v1347, %v1347
    %v1360 = vmul.f32 %v1348, %v1348
    %v1361 = vsub.f32 %v1357, %v1359
    %v1362 = vsub.f32 %v1358, %v1360
    %v1363 = vsub.f32 %v1338, %v1347
    %v1364 = vsub.f32 %v1339, %v1348
    %v1365 = vadd.f32 %v1361, 1e-05
    %v1366 = vadd.f32 %v1362, 1e-05
    %v1367 = vrsqrt.pop %v1365
    %v1368 = vmul.f32 %v1367, %v1365
    %v1369 = vmul.f32 %v1368, %v1367
    %v1370 = vmul.f32 0.5, %v1369
    %v1371 = vsub.f32 1.5, %v1370
    %v1372 = vmul.f32 %v1367, %v1371
    %vm1373 = vweird.f32 %v1365
    %vm1374 = vweird.f32 %v1367
    %vm1375 = vmor %vm1373, %vm1374
    %v1376 = vsel %vm1375, %v1367, %v1372
    %v1377 = vrsqrt.pop %v1366
    %v1378 = vmul.f32 %v1377, %v1366
    %v1379 = vmul.f32 %v1378, %v1377
    %v1380 = vmul.f32 0.5, %v1379
    %v1381 = vsub.f32 1.5, %v1380
    %v1382 = vmul.f32 %v1377, %v1381
    %vm1383 = vweird.f32 %v1366
    %vm1384 = vweird.f32 %v1377
    %vm1385 = vmor %vm1383, %vm1384
    %v1386 = vsel %vm1385, %v1377, %v1382
    %v1387 = vmul.f32 %v1363, %v1376
    %v1388 = vmul.f32 %v1364, %v1386
    %1389 = vrot.lane.b32.xlu0 %v1247, 32
    %v1390 = vpop.permute.xlu0 %1389
    %v1392 = vmul.f32 %v1387, %v1390
    %v1393 = vmul.f32 %v1388, %v1390
    %v1395 = vperm.slane %v1340, 0
    %v1397 = vadd.f32 %v1392, %v1395
    %v1398 = vadd.f32 %v1393, %v1395
    %1399 = vst.msk [vmem:[#allocation2] sm:$0xff] %vm28, %v1397
    %1400 = vst.msk [vmem:[#allocation2 + $0x8] sm:$0xff] %vm28, %v1398
    // Predicated region
    $region18: #{decoder_layer.1} parent=1 // pred_check
      _
    $region19: #{decoder_layer.1} parent=1 // pred_check_branch
      %1402 = sbr.rel (0) target = $region21
    $region20: #{decoder_layer.1} parent=1 // pred_region
      %1404 = vsyncadd [#allocation3], 0
      %s1405 = sshll.u32 [#allocation2], 4
      %s1406 = int_to_ptr.vmem [resolvable:$true] %s1405
      %s1407 = sshll.u32 %s4, 4
      %s1408 = int_to_ptr.hbm [resolvable:$true] %s1407
      %1413 = dma.vmem_to_hbm [thread:$0]  %s1406, 256, %s1408, [#allocation3], 128, 128, 8
    $region21: #{decoder_layer.1} parent=1 // pred_fallthru
      _
    // Predicated region
    $region22: #{decoder_layer.1} parent=1 // pred_check
      _
    $region23: #{decoder_layer.1} parent=1 // pred_check_branch
      %1415 = sbr.rel (0) target = $region25
    $region24: #{decoder_layer.1} parent=1 // pred_region
      %1417 = dma.done [#allocation3], 256
    $region25: #{decoder_layer.1} parent=1 // pred_fallthru
      _
    %1418 = vsyncpa [#allocation3], 1

</llo_original>
